<compile_context>
chip_gen: v7x
topology: tpu7x:2x2x1
jax: 0.10.0
libtpu: 0.0.40
codegen_flags: <defaults>
</compile_context>

<pallas_src>
import functools
import math

import jax
import jax.numpy as jnp
from jax.experimental import pallas as pl
from jax.experimental.pallas import tpu as pltpu


def encoder2_kernel(mask_ref, x_ref,
                    wqkv_ref, bqkv_ref,
                    wo_ref, bo_ref,
                    lnw_ref, lnb_ref,
                    out_ref, act_ref, *, n_heads):
    """One Encoder_layer2 per grid step; activation carried in VMEM scratch.

    mask_ref: (L, L)        additive attention mask (broadcast over B, H)
    x_ref:    (B, L, D)     original input (only read at layer 0)
    wqkv_ref: (1, D, 3D)    fused [Wq|Wk|Wv] for this layer (y = x @ W + b)
    bqkv_ref: (1, 1, 3D)    fused [bq|bk|bv]
    wo_ref:   (1, D, D)     output projection weight
    bo_ref:   (1, 1, D)     output projection bias
    ln*_ref:  (1, 1, D)     LayerNorm affine params
    out_ref:  (B, L, D)     final output (written on last layer only)
    act_ref:  (B*L, D) f32  VMEM-resident activation, persists across layers
    """
    layer = pl.program_id(0)
    B, L, D = x_ref.shape
    BL = B * L
    H = n_heads
    E = D // H
    scale = 1.0 / math.sqrt(E)

    # Load the input activations into the resident scratch once (layer 0).
    @pl.when(layer == 0)
    def _():
        act_ref[...] = x_ref[...].astype(jnp.float32).reshape(BL, D)

    x2 = act_ref[...]                                      # (B*L, D) float32

    # --- fused Q/K/V projection: one (B*L, D) @ (D, 3D) MXU matmul ---
    qkv = jnp.dot(x2, wqkv_ref[0],
                  preferred_element_type=jnp.float32) + bqkv_ref[0]
    q = qkv[:, 0 * D:1 * D].reshape(B, L, D)
    k = qkv[:, 1 * D:2 * D].reshape(B, L, D)
    v = qkv[:, 2 * D:3 * D].reshape(B, L, D)

    mask = mask_ref[...].astype(jnp.float32)[None, :, :]   # (1, L, L)
    wo = wo_ref[0]                                         # (D, D)

    # --- per-head attention, batched over the batch axis; each head's output
    # is folded directly into the output projection (no concatenate). ---
    proj = jnp.zeros((BL, D), jnp.float32)
    for h in range(H):                                     # H is small & static
        cols = slice(h * E, (h + 1) * E)
        qh = q[:, :, cols]                                 # (B, L, E)
        kh = k[:, :, cols]                                 # (B, L, E)
        vh = v[:, :, cols]                                 # (B, L, E)
        s = scale * jnp.einsum('ble,bse->bls', qh, kh,
                               preferred_element_type=jnp.float32) + mask
        s = s - jnp.max(s, axis=-1, keepdims=True)
        p = jnp.exp(s)
        a = p * pl.reciprocal(jnp.sum(p, axis=-1, keepdims=True), approx=True)
        # dropout(p=0.1) on attention weights is identity at inference
        oh = jnp.einsum('bls,bse->ble', a, vh,
                        preferred_element_type=jnp.float32)  # (B, L, E)
        proj = proj + jnp.dot(oh.reshape(BL, E), wo[cols, :],
                              preferred_element_type=jnp.float32)
    proj = proj + bo_ref[0]                                # (B*L, D)

    # --- residual + LayerNorm(eps=1e-5) ---
    y = x2 + proj
    mu = jnp.mean(y, axis=-1, keepdims=True)
    var = jnp.mean((y - mu) * (y - mu), axis=-1, keepdims=True)
    yn = (y - mu) * jax.lax.rsqrt(var + 1e-5)
    yn = yn * lnw_ref[0] + lnb_ref[0]

    act_ref[...] = yn                                      # carry to next layer

    @pl.when(layer == pl.num_programs(0) - 1)
    def _():
        out_ref[...] = yn.reshape(B, L, D).astype(out_ref.dtype)


def encoder2_forward(x, params, attn_mask, n_heads):
    """Apply the whole Encoder2 stack in a single fused pallas_call."""
    B, L, D = x.shape
    n_layers = params["wqkv"].shape[0]
    kernel = functools.partial(encoder2_kernel, n_heads=n_heads)

    const3 = lambda l: (0, 0, 0)
    per_layer = lambda l: (l, 0, 0)

    call = pl.pallas_call(
        kernel,
        out_shape=jax.ShapeDtypeStruct((B, L, D), jnp.float32),
        grid_spec=pltpu.PrefetchScalarGridSpec(
            num_scalar_prefetch=0,
            grid=(n_layers,),
            in_specs=[
                pl.BlockSpec((L, L), lambda l: (0, 0)),        # attn_mask
                pl.BlockSpec((B, L, D), const3),               # x (layer 0 only)
                pl.BlockSpec((1, D, 3 * D), per_layer),        # fused Wqkv
                pl.BlockSpec((1, 1, 3 * D), per_layer),        # fused bqkv
                pl.BlockSpec((1, D, D), per_layer),            # Wo
                pl.BlockSpec((1, 1, D), per_layer),            # bo
                pl.BlockSpec((1, 1, D), per_layer),            # ln weight
                pl.BlockSpec((1, 1, D), per_layer),            # ln bias
            ],
            out_specs=pl.BlockSpec((B, L, D), const3),
            scratch_shapes=[pltpu.VMEM((B * L, D), jnp.float32)],
        ),
        compiler_params=pltpu.CompilerParams(
            dimension_semantics=("arbitrary",)),               # layers are sequential
    )
    return call(attn_mask, x,
                params["wqkv"], params["bqkv"],
                params["wo"], params["bo"],
                params["ln_w"], params["ln_b"])


def init_params(key, hidden_dim, n_layers):
    """Deterministic synthetic parameters, stacked per layer for the fused kernel."""
    D = hidden_dim
    wqkv, bqkv, wo, bo = [], [], [], []
    for l in range(n_layers):
        keys = jax.random.split(jax.random.fold_in(key, l), 8)

        def lin(kw, kb):
            # stored pre-transposed: y = x @ W + b, W has shape (in, out)
            w = 0.1 * jax.random.normal(kw, (D, D), jnp.float32)
            b = 0.1 * jax.random.normal(kb, (1, D), jnp.float32)
            return w, b

        wq, bq = lin(keys[0], keys[1])
        wk, bk = lin(keys[2], keys[3])
        wv, bv = lin(keys[4], keys[5])
        woi, boi = lin(keys[6], keys[7])
        wqkv.append(jnp.concatenate([wq, wk, wv], axis=1))     # (D, 3D)
        bqkv.append(jnp.concatenate([bq, bk, bv], axis=1))     # (1, 3D)
        wo.append(woi)
        bo.append(boi)
    return dict(
        wqkv=jnp.stack(wqkv),                                  # (n_layers, D, 3D)
        bqkv=jnp.stack(bqkv),                                  # (n_layers, 1, 3D)
        wo=jnp.stack(wo),                                      # (n_layers, D, D)
        bo=jnp.stack(bo),                                      # (n_layers, 1, D)
        ln_w=jnp.ones((n_layers, 1, D), jnp.float32),          # LayerNorm defaults
        ln_b=jnp.zeros((n_layers, 1, D), jnp.float32),
    )


def encoder2_reference(x, params, attn_mask, n_heads):
    """Pure-JAX reference matching the PyTorch Encoder2 forward semantics."""
    B, L, D = x.shape
    H = n_heads
    E = D // H
    scale = 1.0 / math.sqrt(E)
    out = x
    for l in range(params["wqkv"].shape[0]):
        x2 = out.reshape(B * L, D)
        qkv = x2 @ params["wqkv"][l] + params["bqkv"][l]
        q, k, v = jnp.split(qkv, 3, axis=-1)
        q = q.reshape(B, L, H, E)
        k = k.reshape(B, L, H, E)
        v = v.reshape(B, L, H, E)
        scores = jnp.einsum('blhe,bshe->bhls', q, k)
        A = jax.nn.softmax(scale * scores + attn_mask[None, None], axis=-1)
        V = jnp.einsum('bhls,bshe->blhe', A, v).reshape(B * L, D)
        proj = V @ params["wo"][l] + params["bo"][l]
        y = x2 + proj
        mu = y.mean(-1, keepdims=True)
        var = ((y - mu) ** 2).mean(-1, keepdims=True)
        yn = (y - mu) / jnp.sqrt(var + 1e-5)
        out = (yn * params["ln_w"][l] + params["ln_b"][l]).reshape(B, L, D)
    return out


if __name__ == "__main__":
    B, L, hidden_dim, n_heads, n_layers = 2, 8, 32, 4, 2

    key = jax.random.PRNGKey(0)
    kx, kp = jax.random.split(key, 2)

    x = jax.random.normal(kx, (B, L, hidden_dim), jnp.float32)
    # additive attention mask (L, S); zeros == no masking, broadcast over B, H
    attn_mask = jnp.zeros((L, L), jnp.float32)

    params = init_params(kp, hidden_dim, n_layers)

    out = encoder2_forward(x, params, attn_mask, n_heads)
    out = jax.block_until_ready(out)
    assert out.shape == (B, L, hidden_dim)

    ref = encoder2_reference(x, params, attn_mask, n_heads)
    assert jnp.allclose(out, ref, rtol=1e-2, atol=1e-2)

    print("KERNEL_OK")
</pallas_src>

<mosaic_0001>
module attributes {stable_mosaic.version = 11 : i64} {
  func.func @encoder2_kernel(%arg0: i32, %arg1: memref<8x8xf32, #tpu.memory_space<vmem>>, %arg2: memref<2x8x32xf32, #tpu.memory_space<vmem>>, %arg3: memref<1x32x96xf32, #tpu.memory_space<vmem>>, %arg4: memref<1x1x96xf32, #tpu.memory_space<vmem>>, %arg5: memref<1x32x32xf32, #tpu.memory_space<vmem>>, %arg6: memref<1x1x32xf32, #tpu.memory_space<vmem>>, %arg7: memref<1x1x32xf32, #tpu.memory_space<vmem>>, %arg8: memref<1x1x32xf32, #tpu.memory_space<vmem>>, %arg9: memref<2x8x32xf32, #tpu.memory_space<vmem>>, %arg10: memref<16x32xf32, #tpu.memory_space<vmem>>) attributes {dimension_semantics = [#tpu.dimension_semantics<arbitrary>], iteration_bounds = array<i64: 2>, scalar_prefetch = 0 : i64, scratch_operands = 1 : i64, tpu.core_type = #tpu.core_type<tc>, window_params = [{pipeline_mode = #tpu.pipeline_mode<synchronous>, transform_indices = @transform_0, window_bounds = array<i64: 8, 8>}, {pipeline_mode = #tpu.pipeline_mode<synchronous>, transform_indices = @transform_1, window_bounds = array<i64: 2, 8, 32>}, {transform_indices = @transform_2, window_bounds = array<i64: 1, 32, 96>}, {transform_indices = @transform_3, window_bounds = array<i64: 1, 1, 96>}, {transform_indices = @transform_4, window_bounds = array<i64: 1, 32, 32>}, {transform_indices = @transform_5, window_bounds = array<i64: 1, 1, 32>}, {transform_indices = @transform_6, window_bounds = array<i64: 1, 1, 32>}, {transform_indices = @transform_7, window_bounds = array<i64: 1, 1, 32>}, {pipeline_mode = #tpu.pipeline_mode<synchronous>, transform_indices = @transform_8, window_bounds = array<i64: 2, 8, 32>}]} {
    %c0_i32 = arith.constant 0 : i32
    %0 = arith.cmpi eq, %arg0, %c0_i32 : i32
    %1 = arith.extui %0 : i1 to i32
    %c0_i32_0 = arith.constant 0 : i32
    %2 = arith.cmpi ne, %1, %c0_i32_0 : i32
    scf.if %2 {
      %c0_55 = arith.constant 0 : index
      %c0_56 = arith.constant 0 : index
      %c0_57 = arith.constant 0 : index
      %151 = vector.load %arg2[%c0_55, %c0_56, %c0_57] : memref<2x8x32xf32, #tpu.memory_space<vmem>>, vector<2x8x32xf32>
      %152 = vector.shape_cast %151 : vector<2x8x32xf32> to vector<16x32xf32>
      %c0_58 = arith.constant 0 : index
      %c0_59 = arith.constant 0 : index
      %153 = vector.load %arg10[%c0_58, %c0_59] : memref<16x32xf32, #tpu.memory_space<vmem>>, vector<16x32xf32>
      tpu.vector_store %arg10[%c0_58, %c0_59], %152 {strides = array<i32>} : memref<16x32xf32, #tpu.memory_space<vmem>>, vector<16x32xf32>,
    } else {
    }
    %c0 = arith.constant 0 : index
    %c0_1 = arith.constant 0 : index
    %3 = vector.load %arg10[%c0, %c0_1] : memref<16x32xf32, #tpu.memory_space<vmem>>, vector<16x32xf32>
    %c0_2 = arith.constant 0 : index
    %c0_3 = arith.constant 0 : index
    %c0_4 = arith.constant 0 : index
    %4 = vector.load %arg3[%c0_2, %c0_3, %c0_4] : memref<1x32x96xf32, #tpu.memory_space<vmem>>, vector<1x32x96xf32>
    %5 = vector.shape_cast %4 : vector<1x32x96xf32> to vector<32x96xf32>
    %cst = arith.constant dense<0.000000e+00> : vector<16x96xf32>
    %6 = tpu.matmul %3, %5, %cst {dimension_numbers = #tpu.dot_dimension_numbers<[1], [0], [0], [1], [0, 0, 1, 1], [], []>} : vector<16x32xf32>, vector<32x96xf32>, vector<16x96xf32> -> vector<16x96xf32>
    %c0_5 = arith.constant 0 : index
    %c0_6 = arith.constant 0 : index
    %c0_7 = arith.constant 0 : index
    %7 = vector.load %arg4[%c0_5, %c0_6, %c0_7] : memref<1x1x96xf32, #tpu.memory_space<vmem>>, vector<1x1x96xf32>
    %8 = vector.shape_cast %7 : vector<1x1x96xf32> to vector<1x96xf32>
    %9 = vector.broadcast %8 : vector<1x96xf32> to vector<16x96xf32>
    %10 = arith.addf %6, %9 : vector<16x96xf32>
    %11 = vector.extract_strided_slice %10 {offsets = [0, 0], sizes = [16, 32], strides = [1, 1]} : vector<16x96xf32> to vector<16x32xf32>
    %12 = vector.shape_cast %11 : vector<16x32xf32> to vector<2x8x32xf32>
    %13 = vector.extract_strided_slice %10 {offsets = [0, 32], sizes = [16, 32], strides = [1, 1]} : vector<16x96xf32> to vector<16x32xf32>
    %14 = vector.shape_cast %13 : vector<16x32xf32> to vector<2x8x32xf32>
    %15 = vector.extract_strided_slice %10 {offsets = [0, 64], sizes = [16, 32], strides = [1, 1]} : vector<16x96xf32> to vector<16x32xf32>
    %16 = vector.shape_cast %15 : vector<16x32xf32> to vector<2x8x32xf32>
    %c0_8 = arith.constant 0 : index
    %c0_9 = arith.constant 0 : index
    %17 = vector.load %arg1[%c0_8, %c0_9] : memref<8x8xf32, #tpu.memory_space<vmem>>, vector<8x8xf32>
    %18 = vector.shape_cast %17 : vector<8x8xf32> to vector<1x8x8xf32>
    %c0_10 = arith.constant 0 : index
    %c0_11 = arith.constant 0 : index
    %c0_12 = arith.constant 0 : index
    %19 = vector.load %arg5[%c0_10, %c0_11, %c0_12] : memref<1x32x32xf32, #tpu.memory_space<vmem>>, vector<1x32x32xf32>
    %20 = vector.shape_cast %19 : vector<1x32x32xf32> to vector<32x32xf32>
    %cst_13 = arith.constant 0.000000e+00 : f32
    %21 = vector.broadcast %cst_13 : f32 to vector<16x32xf32>
    %22 = vector.extract_strided_slice %12 {offsets = [0, 0, 0], sizes = [2, 8, 8], strides = [1, 1, 1]} : vector<2x8x32xf32> to vector<2x8x8xf32>
    %23 = vector.extract_strided_slice %14 {offsets = [0, 0, 0], sizes = [2, 8, 8], strides = [1, 1, 1]} : vector<2x8x32xf32> to vector<2x8x8xf32>
    %24 = vector.extract_strided_slice %16 {offsets = [0, 0, 0], sizes = [2, 8, 8], strides = [1, 1, 1]} : vector<2x8x32xf32> to vector<2x8x8xf32>
    "tpu.trace_start"() <{level = 10 : i32, message = "ble,bse->bls"}> : () -> ()
    %cst_14 = arith.constant dense<0.000000e+00> : vector<2x8x8xf32>
    %25 = tpu.matmul %22, %23, %cst_14 {dimension_numbers = #tpu.dot_dimension_numbers<[2], [2], [1], [1], [0, 0, 0, 1, 1, 1], [0], [0]>} : vector<2x8x8xf32>, vector<2x8x8xf32>, vector<2x8x8xf32> -> vector<2x8x8xf32>
    "tpu.trace_stop"() : () -> ()
    %cst_15 = arith.constant 0.353553385 : f32
    %26 = vector.broadcast %cst_15 : f32 to vector<2x8x8xf32>
    %27 = arith.mulf %26, %25 : vector<2x8x8xf32>
    %28 = vector.broadcast %18 : vector<1x8x8xf32> to vector<2x8x8xf32>
    %29 = arith.addf %27, %28 : vector<2x8x8xf32>
    %cst_16 = arith.constant dense<0xFF800000> : vector<2x8xf32>
    %30 = vector.multi_reduction <maximumf>, %29, %cst_16 [2] : vector<2x8x8xf32> to vector<2x8xf32>
    %31 = vector.shape_cast %30 : vector<2x8xf32> to vector<2x8x1xf32>
    %32 = vector.broadcast %31 : vector<2x8x1xf32> to vector<2x8x8xf32>
    %33 = arith.subf %29, %32 : vector<2x8x8xf32>
    %34 = math.exp %33 : vector<2x8x8xf32>
    %cst_17 = arith.constant dense<0.000000e+00> : vector<2x8xf32>
    %35 = vector.multi_reduction <add>, %34, %cst_17 [2] : vector<2x8x8xf32> to vector<2x8xf32>
    %36 = vector.shape_cast %35 : vector<2x8xf32> to vector<2x8x1xf32>
    %37 = tpu.reciprocal %36 {approx = true} : vector<2x8x1xf32> -> vector<2x8x1xf32>
    %38 = vector.broadcast %37 : vector<2x8x1xf32> to vector<2x8x8xf32>
    %39 = arith.mulf %34, %38 : vector<2x8x8xf32>
    "tpu.trace_start"() <{level = 10 : i32, message = "bls,bse->ble"}> : () -> ()
    %cst_18 = arith.constant dense<0.000000e+00> : vector<2x8x8xf32>
    %40 = tpu.matmul %39, %24, %cst_18 {dimension_numbers = #tpu.dot_dimension_numbers<[2], [1], [1], [2], [0, 0, 0, 1, 1, 2], [0], [0]>} : vector<2x8x8xf32>, vector<2x8x8xf32>, vector<2x8x8xf32> -> vector<2x8x8xf32>
    "tpu.trace_stop"() : () -> ()
    %41 = vector.shape_cast %40 : vector<2x8x8xf32> to vector<16x8xf32>
    %42 = vector.extract_strided_slice %20 {offsets = [0, 0], sizes = [8, 32], strides = [1, 1]} : vector<32x32xf32> to vector<8x32xf32>
    %cst_19 = arith.constant dense<0.000000e+00> : vector<16x32xf32>
    %43 = tpu.matmul %41, %42, %cst_19 {dimension_numbers = #tpu.dot_dimension_numbers<[1], [0], [0], [1], [0, 0, 1, 1], [], []>} : vector<16x8xf32>, vector<8x32xf32>, vector<16x32xf32> -> vector<16x32xf32>
    %44 = arith.addf %21, %43 : vector<16x32xf32>
    %45 = vector.extract_strided_slice %12 {offsets = [0, 0, 8], sizes = [2, 8, 8], strides = [1, 1, 1]} : vector<2x8x32xf32> to vector<2x8x8xf32>
    %46 = vector.extract_strided_slice %14 {offsets = [0, 0, 8], sizes = [2, 8, 8], strides = [1, 1, 1]} : vector<2x8x32xf32> to vector<2x8x8xf32>
    %47 = vector.extract_strided_slice %16 {offsets = [0, 0, 8], sizes = [2, 8, 8], strides = [1, 1, 1]} : vector<2x8x32xf32> to vector<2x8x8xf32>
    "tpu.trace_start"() <{level = 10 : i32, message = "ble,bse->bls"}> : () -> ()
    %cst_20 = arith.constant dense<0.000000e+00> : vector<2x8x8xf32>
    %48 = tpu.matmul %45, %46, %cst_20 {dimension_numbers = #tpu.dot_dimension_numbers<[2], [2], [1], [1], [0, 0, 0, 1, 1, 1], [0], [0]>} : vector<2x8x8xf32>, vector<2x8x8xf32>, vector<2x8x8xf32> -> vector<2x8x8xf32>
    "tpu.trace_stop"() : () -> ()
    %cst_21 = arith.constant 0.353553385 : f32
    %49 = vector.broadcast %cst_21 : f32 to vector<2x8x8xf32>
    %50 = arith.mulf %49, %48 : vector<2x8x8xf32>
    %51 = vector.broadcast %18 : vector<1x8x8xf32> to vector<2x8x8xf32>
    %52 = arith.addf %50, %51 : vector<2x8x8xf32>
    %cst_22 = arith.constant dense<0xFF800000> : vector<2x8xf32>
    %53 = vector.multi_reduction <maximumf>, %52, %cst_22 [2] : vector<2x8x8xf32> to vector<2x8xf32>
    %54 = vector.shape_cast %53 : vector<2x8xf32> to vector<2x8x1xf32>
    %55 = vector.broadcast %54 : vector<2x8x1xf32> to vector<2x8x8xf32>
    %56 = arith.subf %52, %55 : vector<2x8x8xf32>
    %57 = math.exp %56 : vector<2x8x8xf32>
    %cst_23 = arith.constant dense<0.000000e+00> : vector<2x8xf32>
    %58 = vector.multi_reduction <add>, %57, %cst_23 [2] : vector<2x8x8xf32> to vector<2x8xf32>
    %59 = vector.shape_cast %58 : vector<2x8xf32> to vector<2x8x1xf32>
    %60 = tpu.reciprocal %59 {approx = true} : vector<2x8x1xf32> -> vector<2x8x1xf32>
    %61 = vector.broadcast %60 : vector<2x8x1xf32> to vector<2x8x8xf32>
    %62 = arith.mulf %57, %61 : vector<2x8x8xf32>
    "tpu.trace_start"() <{level = 10 : i32, message = "bls,bse->ble"}> : () -> ()
    %cst_24 = arith.constant dense<0.000000e+00> : vector<2x8x8xf32>
    %63 = tpu.matmul %62, %47, %cst_24 {dimension_numbers = #tpu.dot_dimension_numbers<[2], [1], [1], [2], [0, 0, 0, 1, 1, 2], [0], [0]>} : vector<2x8x8xf32>, vector<2x8x8xf32>, vector<2x8x8xf32> -> vector<2x8x8xf32>
    "tpu.trace_stop"() : () -> ()
    %64 = vector.shape_cast %63 : vector<2x8x8xf32> to vector<16x8xf32>
    %65 = vector.extract_strided_slice %20 {offsets = [8, 0], sizes = [8, 32], strides = [1, 1]} : vector<32x32xf32> to vector<8x32xf32>
    %cst_25 = arith.constant dense<0.000000e+00> : vector<16x32xf32>
    %66 = tpu.matmul %64, %65, %cst_25 {dimension_numbers = #tpu.dot_dimension_numbers<[1], [0], [0], [1], [0, 0, 1, 1], [], []>} : vector<16x8xf32>, vector<8x32xf32>, vector<16x32xf32> -> vector<16x32xf32>
    %67 = arith.addf %44, %66 : vector<16x32xf32>
    %68 = vector.extract_strided_slice %12 {offsets = [0, 0, 16], sizes = [2, 8, 8], strides = [1, 1, 1]} : vector<2x8x32xf32> to vector<2x8x8xf32>
    %69 = vector.extract_strided_slice %14 {offsets = [0, 0, 16], sizes = [2, 8, 8], strides = [1, 1, 1]} : vector<2x8x32xf32> to vector<2x8x8xf32>
    %70 = vector.extract_strided_slice %16 {offsets = [0, 0, 16], sizes = [2, 8, 8], strides = [1, 1, 1]} : vector<2x8x32xf32> to vector<2x8x8xf32>
    "tpu.trace_start"() <{level = 10 : i32, message = "ble,bse->bls"}> : () -> ()
    %cst_26 = arith.constant dense<0.000000e+00> : vector<2x8x8xf32>
    %71 = tpu.matmul %68, %69, %cst_26 {dimension_numbers = #tpu.dot_dimension_numbers<[2], [2], [1], [1], [0, 0, 0, 1, 1, 1], [0], [0]>} : vector<2x8x8xf32>, vector<2x8x8xf32>, vector<2x8x8xf32> -> vector<2x8x8xf32>
    "tpu.trace_stop"() : () -> ()
    %cst_27 = arith.constant 0.353553385 : f32
    %72 = vector.broadcast %cst_27 : f32 to vector<2x8x8xf32>
    %73 = arith.mulf %72, %71 : vector<2x8x8xf32>
    %74 = vector.broadcast %18 : vector<1x8x8xf32> to vector<2x8x8xf32>
    %75 = arith.addf %73, %74 : vector<2x8x8xf32>
    %cst_28 = arith.constant dense<0xFF800000> : vector<2x8xf32>
    %76 = vector.multi_reduction <maximumf>, %75, %cst_28 [2] : vector<2x8x8xf32> to vector<2x8xf32>
    %77 = vector.shape_cast %76 : vector<2x8xf32> to vector<2x8x1xf32>
    %78 = vector.broadcast %77 : vector<2x8x1xf32> to vector<2x8x8xf32>
    %79 = arith.subf %75, %78 : vector<2x8x8xf32>
    %80 = math.exp %79 : vector<2x8x8xf32>
    %cst_29 = arith.constant dense<0.000000e+00> : vector<2x8xf32>
    %81 = vector.multi_reduction <add>, %80, %cst_29 [2] : vector<2x8x8xf32> to vector<2x8xf32>
    %82 = vector.shape_cast %81 : vector<2x8xf32> to vector<2x8x1xf32>
    %83 = tpu.reciprocal %82 {approx = true} : vector<2x8x1xf32> -> vector<2x8x1xf32>
    %84 = vector.broadcast %83 : vector<2x8x1xf32> to vector<2x8x8xf32>
    %85 = arith.mulf %80, %84 : vector<2x8x8xf32>
    "tpu.trace_start"() <{level = 10 : i32, message = "bls,bse->ble"}> : () -> ()
    %cst_30 = arith.constant dense<0.000000e+00> : vector<2x8x8xf32>
    %86 = tpu.matmul %85, %70, %cst_30 {dimension_numbers = #tpu.dot_dimension_numbers<[2], [1], [1], [2], [0, 0, 0, 1, 1, 2], [0], [0]>} : vector<2x8x8xf32>, vector<2x8x8xf32>, vector<2x8x8xf32> -> vector<2x8x8xf32>
    "tpu.trace_stop"() : () -> ()
    %87 = vector.shape_cast %86 : vector<2x8x8xf32> to vector<16x8xf32>
    %88 = vector.extract_strided_slice %20 {offsets = [16, 0], sizes = [8, 32], strides = [1, 1]} : vector<32x32xf32> to vector<8x32xf32>
    %cst_31 = arith.constant dense<0.000000e+00> : vector<16x32xf32>
    %89 = tpu.matmul %87, %88, %cst_31 {dimension_numbers = #tpu.dot_dimension_numbers<[1], [0], [0], [1], [0, 0, 1, 1], [], []>} : vector<16x8xf32>, vector<8x32xf32>, vector<16x32xf32> -> vector<16x32xf32>
    %90 = arith.addf %67, %89 : vector<16x32xf32>
    %91 = vector.extract_strided_slice %12 {offsets = [0, 0, 24], sizes = [2, 8, 8], strides = [1, 1, 1]} : vector<2x8x32xf32> to vector<2x8x8xf32>
    %92 = vector.extract_strided_slice %14 {offsets = [0, 0, 24], sizes = [2, 8, 8], strides = [1, 1, 1]} : vector<2x8x32xf32> to vector<2x8x8xf32>
    %93 = vector.extract_strided_slice %16 {offsets = [0, 0, 24], sizes = [2, 8, 8], strides = [1, 1, 1]} : vector<2x8x32xf32> to vector<2x8x8xf32>
    "tpu.trace_start"() <{level = 10 : i32, message = "ble,bse->bls"}> : () -> ()
    %cst_32 = arith.constant dense<0.000000e+00> : vector<2x8x8xf32>
    %94 = tpu.matmul %91, %92, %cst_32 {dimension_numbers = #tpu.dot_dimension_numbers<[2], [2], [1], [1], [0, 0, 0, 1, 1, 1], [0], [0]>} : vector<2x8x8xf32>, vector<2x8x8xf32>, vector<2x8x8xf32> -> vector<2x8x8xf32>
    "tpu.trace_stop"() : () -> ()
    %cst_33 = arith.constant 0.353553385 : f32
    %95 = vector.broadcast %cst_33 : f32 to vector<2x8x8xf32>
    %96 = arith.mulf %95, %94 : vector<2x8x8xf32>
    %97 = vector.broadcast %18 : vector<1x8x8xf32> to vector<2x8x8xf32>
    %98 = arith.addf %96, %97 : vector<2x8x8xf32>
    %cst_34 = arith.constant dense<0xFF800000> : vector<2x8xf32>
    %99 = vector.multi_reduction <maximumf>, %98, %cst_34 [2] : vector<2x8x8xf32> to vector<2x8xf32>
    %100 = vector.shape_cast %99 : vector<2x8xf32> to vector<2x8x1xf32>
    %101 = vector.broadcast %100 : vector<2x8x1xf32> to vector<2x8x8xf32>
    %102 = arith.subf %98, %101 : vector<2x8x8xf32>
    %103 = math.exp %102 : vector<2x8x8xf32>
    %cst_35 = arith.constant dense<0.000000e+00> : vector<2x8xf32>
    %104 = vector.multi_reduction <add>, %103, %cst_35 [2] : vector<2x8x8xf32> to vector<2x8xf32>
    %105 = vector.shape_cast %104 : vector<2x8xf32> to vector<2x8x1xf32>
    %106 = tpu.reciprocal %105 {approx = true} : vector<2x8x1xf32> -> vector<2x8x1xf32>
    %107 = vector.broadcast %106 : vector<2x8x1xf32> to vector<2x8x8xf32>
    %108 = arith.mulf %103, %107 : vector<2x8x8xf32>
    "tpu.trace_start"() <{level = 10 : i32, message = "bls,bse->ble"}> : () -> ()
    %cst_36 = arith.constant dense<0.000000e+00> : vector<2x8x8xf32>
    %109 = tpu.matmul %108, %93, %cst_36 {dimension_numbers = #tpu.dot_dimension_numbers<[2], [1], [1], [2], [0, 0, 0, 1, 1, 2], [0], [0]>} : vector<2x8x8xf32>, vector<2x8x8xf32>, vector<2x8x8xf32> -> vector<2x8x8xf32>
    "tpu.trace_stop"() : () -> ()
    %110 = vector.shape_cast %109 : vector<2x8x8xf32> to vector<16x8xf32>
    %111 = vector.extract_strided_slice %20 {offsets = [24, 0], sizes = [8, 32], strides = [1, 1]} : vector<32x32xf32> to vector<8x32xf32>
    %cst_37 = arith.constant dense<0.000000e+00> : vector<16x32xf32>
    %112 = tpu.matmul %110, %111, %cst_37 {dimension_numbers = #tpu.dot_dimension_numbers<[1], [0], [0], [1], [0, 0, 1, 1], [], []>} : vector<16x8xf32>, vector<8x32xf32>, vector<16x32xf32> -> vector<16x32xf32>
    %113 = arith.addf %90, %112 : vector<16x32xf32>
    %c0_38 = arith.constant 0 : index
    %c0_39 = arith.constant 0 : index
    %c0_40 = arith.constant 0 : index
    %114 = vector.load %arg6[%c0_38, %c0_39, %c0_40] : memref<1x1x32xf32, #tpu.memory_space<vmem>>, vector<1x1x32xf32>
    %115 = vector.shape_cast %114 : vector<1x1x32xf32> to vector<1x32xf32>
    %116 = vector.broadcast %115 : vector<1x32xf32> to vector<16x32xf32>
    %117 = arith.addf %113, %116 : vector<16x32xf32>
    %118 = arith.addf %3, %117 : vector<16x32xf32>
    %cst_41 = arith.constant dense<0.000000e+00> : vector<16xf32>
    %119 = vector.multi_reduction <add>, %118, %cst_41 [1] : vector<16x32xf32> to vector<16xf32>
    %120 = vector.shape_cast %119 : vector<16xf32> to vector<16x1xf32>
    %cst_42 = arith.constant 3.200000e+01 : f32
    %121 = vector.broadcast %cst_42 : f32 to vector<16x1xf32>
    %122 = arith.divf %120, %121 : vector<16x1xf32>
    %123 = vector.broadcast %122 : vector<16x1xf32> to vector<16x32xf32>
    %124 = arith.subf %118, %123 : vector<16x32xf32>
    %125 = vector.broadcast %122 : vector<16x1xf32> to vector<16x32xf32>
    %126 = arith.subf %118, %125 : vector<16x32xf32>
    %127 = arith.mulf %124, %126 : vector<16x32xf32>
    %cst_43 = arith.constant dense<0.000000e+00> : vector<16xf32>
    %128 = vector.multi_reduction <add>, %127, %cst_43 [1] : vector<16x32xf32> to vector<16xf32>
    %129 = vector.shape_cast %128 : vector<16xf32> to vector<16x1xf32>
    %cst_44 = arith.constant 3.200000e+01 : f32
    %130 = vector.broadcast %cst_44 : f32 to vector<16x1xf32>
    %131 = arith.divf %129, %130 : vector<16x1xf32>
    %132 = vector.broadcast %122 : vector<16x1xf32> to vector<16x32xf32>
    %133 = arith.subf %118, %132 : vector<16x32xf32>
    %cst_45 = arith.constant 9.99999974E-6 : f32
    %134 = vector.broadcast %cst_45 : f32 to vector<16x1xf32>
    %135 = arith.addf %131, %134 : vector<16x1xf32>
    %136 = math.rsqrt %135 : vector<16x1xf32>
    %137 = vector.broadcast %136 : vector<16x1xf32> to vector<16x32xf32>
    %138 = arith.mulf %133, %137 : vector<16x32xf32>
    %c0_46 = arith.constant 0 : index
    %c0_47 = arith.constant 0 : index
    %c0_48 = arith.constant 0 : index
    %139 = vector.load %arg7[%c0_46, %c0_47, %c0_48] : memref<1x1x32xf32, #tpu.memory_space<vmem>>, vector<1x1x32xf32>
    %140 = vector.shape_cast %139 : vector<1x1x32xf32> to vector<1x32xf32>
    %141 = vector.broadcast %140 : vector<1x32xf32> to vector<16x32xf32>
    %142 = arith.mulf %138, %141 : vector<16x32xf32>
    %c0_49 = arith.constant 0 : index
    %c0_50 = arith.constant 0 : index
    %c0_51 = arith.constant 0 : index
    %143 = vector.load %arg8[%c0_49, %c0_50, %c0_51] : memref<1x1x32xf32, #tpu.memory_space<vmem>>, vector<1x1x32xf32>
    %144 = vector.shape_cast %143 : vector<1x1x32xf32> to vector<1x32xf32>
    %145 = vector.broadcast %144 : vector<1x32xf32> to vector<16x32xf32>
    %146 = arith.addf %142, %145 : vector<16x32xf32>
    %c0_52 = arith.constant 0 : index
    %c0_53 = arith.constant 0 : index
    %147 = vector.load %arg10[%c0_52, %c0_53] : memref<16x32xf32, #tpu.memory_space<vmem>>, vector<16x32xf32>
    tpu.vector_store %arg10[%c0_52, %c0_53], %146 {strides = array<i32>} : memref<16x32xf32, #tpu.memory_space<vmem>>, vector<16x32xf32>,
    %c1_i32 = arith.constant 1 : i32
    %148 = arith.cmpi eq, %arg0, %c1_i32 : i32
    %149 = arith.extui %148 : i1 to i32
    %c0_i32_54 = arith.constant 0 : i32
    %150 = arith.cmpi ne, %149, %c0_i32_54 : i32
    scf.if %150 {
      %151 = vector.shape_cast %146 : vector<16x32xf32> to vector<2x8x32xf32>
      %c0_55 = arith.constant 0 : index
      %c0_56 = arith.constant 0 : index
      %c0_57 = arith.constant 0 : index
      %152 = vector.load %arg9[%c0_55, %c0_56, %c0_57] : memref<2x8x32xf32, #tpu.memory_space<vmem>>, vector<2x8x32xf32>
      tpu.vector_store %arg9[%c0_55, %c0_56, %c0_57], %151 {strides = array<i32>} : memref<2x8x32xf32, #tpu.memory_space<vmem>>, vector<2x8x32xf32>,
    } else {
    }
    return
  }
  func.func @transform_0(%arg0: i32) -> (i32, i32) {
    %c0_i32 = arith.constant 0 : i32
    %c0_i32_0 = arith.constant 0 : i32
    %c0_i32_1 = arith.constant 0 : i32
    return %c0_i32, %c0_i32_0 : i32, i32
  }
  func.func @transform_1(%arg0: i32) -> (i32, i32, i32) {
    %c0_i32 = arith.constant 0 : i32
    %c0_i32_0 = arith.constant 0 : i32
    %c0_i32_1 = arith.constant 0 : i32
    %c0_i32_2 = arith.constant 0 : i32
    return %c0_i32, %c0_i32_0, %c0_i32_1 : i32, i32, i32
  }
  func.func @transform_2(%arg0: i32) -> (i32, i32, i32) {
    %c0_i32 = arith.constant 0 : i32
    %c0_i32_0 = arith.constant 0 : i32
    %c0_i32_1 = arith.constant 0 : i32
    return %arg0, %c0_i32, %c0_i32_0 : i32, i32, i32
  }
  func.func @transform_3(%arg0: i32) -> (i32, i32, i32) {
    %c0_i32 = arith.constant 0 : i32
    %c0_i32_0 = arith.constant 0 : i32
    %c0_i32_1 = arith.constant 0 : i32
    return %arg0, %c0_i32, %c0_i32_0 : i32, i32, i32
  }
  func.func @transform_4(%arg0: i32) -> (i32, i32, i32) {
    %c0_i32 = arith.constant 0 : i32
    %c0_i32_0 = arith.constant 0 : i32
    %c0_i32_1 = arith.constant 0 : i32
    return %arg0, %c0_i32, %c0_i32_0 : i32, i32, i32
  }
  func.func @transform_5(%arg0: i32) -> (i32, i32, i32) {
    %c0_i32 = arith.constant 0 : i32
    %c0_i32_0 = arith.constant 0 : i32
    %c0_i32_1 = arith.constant 0 : i32
    return %arg0, %c0_i32, %c0_i32_0 : i32, i32, i32
  }
  func.func @transform_6(%arg0: i32) -> (i32, i32, i32) {
    %c0_i32 = arith.constant 0 : i32
    %c0_i32_0 = arith.constant 0 : i32
    %c0_i32_1 = arith.constant 0 : i32
    return %arg0, %c0_i32, %c0_i32_0 : i32, i32, i32
  }
  func.func @transform_7(%arg0: i32) -> (i32, i32, i32) {
    %c0_i32 = arith.constant 0 : i32
    %c0_i32_0 = arith.constant 0 : i32
    %c0_i32_1 = arith.constant 0 : i32
    return %arg0, %c0_i32, %c0_i32_0 : i32, i32, i32
  }
  func.func @transform_8(%arg0: i32) -> (i32, i32, i32) {
    %c0_i32 = arith.constant 0 : i32
    %c0_i32_0 = arith.constant 0 : i32
    %c0_i32_1 = arith.constant 0 : i32
    %c0_i32_2 = arith.constant 0 : i32
    return %c0_i32, %c0_i32_0, %c0_i32_1 : i32, i32, i32
  }
}

</mosaic_0001>

<llo_original>
// kernel: tpu_custom_call.1
$region0: #{tpu_custom_call.1}
  #allocation0 [shape = 'u32[]', space=smem, size = 0x4, offset = 0x4, fixed_abs, tag = 'smem constant byte address 0x4 - core index']
  #allocation1 [shape = 'u32[144,128]{1,0:T(1,128)}', space=vmem, size = 0x12000, scoped, tag = 'internal scratch']
  #allocation2 [shape = 'f32[16,32]{1,0:T(8,128)}', space=vmem, size = 0x2000, scoped, tag = 'scratch operand']
  %s0 = inlined_call_operand.hbm [shape: f32[8,8], index: 0, kind: input, shape index: {}]
  %s1 = inlined_call_operand.hbm [shape: f32[2,8,32], index: 1, kind: input, shape index: {}]
  %s2 = inlined_call_operand.hbm [shape: f32[2,32,96], index: 2, kind: input, shape index: {}]
  %s3 = inlined_call_operand.vmem [shape: f32[2,1,96], index: 3, kind: input, shape index: {}]
  %s4 = inlined_call_operand.hbm [shape: f32[2,32,32], index: 4, kind: input, shape index: {}]
  %s5 = inlined_call_operand.vmem [shape: f32[2,1,32], index: 5, kind: input, shape index: {}]
  %s6 = inlined_call_operand.vmem [shape: f32[2,1,32], index: 6, kind: input, shape index: {}]
  %s7 = inlined_call_operand.vmem [shape: f32[2,1,32], index: 7, kind: input, shape index: {}]
  %s8 = inlined_call_operand.hbm [shape: f32[2,8,32], index: 8, kind: output, shape index: {}]
  %s9 = sld [smem:[#allocation0]]
  $region89: #{tpu_custom_call.1} parent=0
    _
  %s11 = ssub.s32 1, %s9
  %s12 = scalar_select 0, %s11, %s9
  $region1: #{tpu_custom_call.1} parent=0
    #allocation3 [shape = 'u8[4096]{0}', space=vmem, size = 0x1000, scoped, tag = 'input window, operand 0, single buffered']
    #allocation4 [shape = 's32[2]{0}', space=sflag, size = 0x8, scoped, tag = 'scoped memory for tpu_custom_call.1']
    #allocation5 [shape = 's32[2]{0}', space=sflag, size = 0x8, scoped, tag = 'scoped memory for tpu_custom_call.1']
    #allocation6 [shape = 'u8[8192]{0}', space=vmem, size = 0x2000, scoped, tag = 'input window, operand 1, single buffered']
    #allocation7 [shape = 's32[1]{0}', space=sflag, size = 0x4, scoped, tag = 'scoped memory for tpu_custom_call.1']
    #allocation8 [shape = 'u8[32768]{0}', space=vmem, size = 0x8000, scoped, tag = 'input window, operand 2']
    #allocation9 [shape = 'u8[32768]{0}', space=vmem, size = 0x8000, scoped, tag = 'input window, operand 4']
    #allocation10 [shape = 'u8[8192]{0}', space=vmem, size = 0x2000, scoped, tag = 'output window, operand 0, single buffered']
    %13 = vsyncpa [#allocation4], 0
    %14 = vsyncpa [#allocation7], 0
    %15 = vsyncpa [#allocation5], 0
    loop: start=0, step=1, limit=4
    $region2: #{tpu_custom_call.1} parent=1 // loop_pre_header
      _
    $region3: #{tpu_custom_call.1} parent=1 // loop_header
      %s17 = sphi 0, %s21
      %p18 = scmp.ge.s32.totalorder %s17, 4
      %s25 = sphi 0, %s25
      %s27 = sphi 0, %s25
      %s28 = sphi 0, %s27
      %s42 = sphi 0, %s28
      %s46 = sphi 0, %s46
      %s48 = sphi 0, %s46
      %s49 = sphi 0, %s48
      %s63 = sphi 0, %s49
      %s69 = sphi 0, %s71
      %s72 = sphi 0, %s69
      %s73 = sphi 0, %s72
      %s89 = sphi 0, %s73
      %s95 = sphi 0, %s97
      %s98 = sphi 0, %s95
      %s99 = sphi 0, %s98
      %s115 = sphi 0, %s99
      %s121 = sphi 0, %s123
      %s124 = sphi 0, %s121
      %s125 = sphi 0, %s124
      %s141 = sphi 0, %s125
      %s147 = sphi 0, %s149
      %s150 = sphi 0, %s147
      %s151 = sphi 0, %s150
      %s167 = sphi 0, %s151
      %s173 = sphi 0, %s175
      %s176 = sphi 0, %s173
      %s177 = sphi 0, %s176
      %s193 = sphi 0, %s177
      %s199 = sphi 0, %s201
      %s202 = sphi 0, %s199
      %s203 = sphi 0, %s202
      %s219 = sphi 0, %s203
      %s223 = sphi 0, %s223
      %s225 = sphi 0, %s223
      %s226 = sphi 0, %s225
      %s240 = sphi 0, %s226
    $region4: #{tpu_custom_call.1} parent=1 // loop_header_branch
      %20 = sbr.rel (%p18) target = $region8
    $region5: #{tpu_custom_call.1} parent=1 // loop_body
      %s22 = ssub.s32 %s17, 1
      %s23 = ssub.s32 %s17, 2
      %s24 = sadd.s32 %s17, 1
      %s26 = sadd.s32 %s25, 1
      %p29 = scmp.eq.s32.totalorder %s17, 1
      %p30 = scmp.ne.s32.totalorder %s25, %s27
      %p31 = scmp.eq.s32.totalorder %s17, 0
      %p32 = por %p30, %p31
      %p33 = scmp.ne.s32.totalorder %s25, %s27
      %p34 = scmp.eq.s32.totalorder %s22, 1
      %p35 = por %p33, %p34
      %p36 = scmp.ne.s32.totalorder %s27, %s28
      %p37 = scmp.eq.s32.totalorder %s22, 0
      %p38 = por %p36, %p37
      %p39 = scmp.ne.s32.totalorder %s27, %s28
      %p40 = scmp.eq.s32.totalorder %s23, 1
      %p41 = por %p39, %p40
      %p43 = scmp.ne.s32.totalorder %s28, %s42
      %p44 = scmp.eq.s32.totalorder %s23, 0
      %p45 = por %p43, %p44
      %s47 = sadd.s32 %s46, 1
      %p50 = scmp.eq.s32.totalorder %s17, 1
      %p51 = scmp.ne.s32.totalorder %s46, %s48
      %p52 = scmp.eq.s32.totalorder %s17, 0
      %p53 = por %p51, %p52
      %p54 = scmp.ne.s32.totalorder %s46, %s48
      %p55 = scmp.eq.s32.totalorder %s22, 1
      %p56 = por %p54, %p55
      %p57 = scmp.ne.s32.totalorder %s48, %s49
      %p58 = scmp.eq.s32.totalorder %s22, 0
      %p59 = por %p57, %p58
      %p60 = scmp.ne.s32.totalorder %s48, %s49
      %p61 = scmp.eq.s32.totalorder %s23, 1
      %p62 = por %p60, %p61
      %p64 = scmp.ne.s32.totalorder %s49, %s63
      %p65 = scmp.eq.s32.totalorder %s23, 0
      %p66 = por %p64, %p65
      %s67 = ssub.s32 %s17, %s24
      %p68 = scmp.eq.s32.totalorder %s67, 0
      %s70 = sadd.s32 %s69, 1
      %s71 = scalar_select %p68, %s69, %s70
      %p74 = pneg %p68
      %p75 = scmp.eq.s32.totalorder %s17, 1
      %p76 = por %p74, %p75
      %p77 = scmp.ne.s32.totalorder %s69, %s72
      %p78 = scmp.eq.s32.totalorder %s17, 0
      %p79 = por %p77, %p78
      %p80 = scmp.ne.s32.totalorder %s69, %s72
      %p81 = scmp.eq.s32.totalorder %s22, 1
      %p82 = por %p80, %p81
      %p83 = scmp.ne.s32.totalorder %s72, %s73
      %p84 = scmp.eq.s32.totalorder %s22, 0
      %p85 = por %p83, %p84
      %p86 = scmp.ne.s32.totalorder %s72, %s73
      %p87 = scmp.eq.s32.totalorder %s23, 1
      %p88 = por %p86, %p87
      %p90 = scmp.ne.s32.totalorder %s73, %s89
      %p91 = scmp.eq.s32.totalorder %s23, 0
      %p92 = por %p90, %p91
      %s93 = ssub.s32 %s17, %s24
      %p94 = scmp.eq.s32.totalorder %s93, 0
      %s96 = sadd.s32 %s95, 1
      %s97 = scalar_select %p94, %s95, %s96
      %p100 = pneg %p94
      %p101 = scmp.eq.s32.totalorder %s17, 1
      %p102 = por %p100, %p101
      %p103 = scmp.ne.s32.totalorder %s95, %s98
      %p104 = scmp.eq.s32.totalorder %s17, 0
      %p105 = por %p103, %p104
      %p106 = scmp.ne.s32.totalorder %s95, %s98
      %p107 = scmp.eq.s32.totalorder %s22, 1
      %p108 = por %p106, %p107
      %p109 = scmp.ne.s32.totalorder %s98, %s99
      %p110 = scmp.eq.s32.totalorder %s22, 0
      %p111 = por %p109, %p110
      %p112 = scmp.ne.s32.totalorder %s98, %s99
      %p113 = scmp.eq.s32.totalorder %s23, 1
      %p114 = por %p112, %p113
      %p116 = scmp.ne.s32.totalorder %s99, %s115
      %p117 = scmp.eq.s32.totalorder %s23, 0
      %p118 = por %p116, %p117
      %s119 = ssub.s32 %s17, %s24
      %p120 = scmp.eq.s32.totalorder %s119, 0
      %s122 = sadd.s32 %s121, 1
      %s123 = scalar_select %p120, %s121, %s122
      %p126 = pneg %p120
      %p127 = scmp.eq.s32.totalorder %s17, 1
      %p128 = por %p126, %p127
      %p129 = scmp.ne.s32.totalorder %s121, %s124
      %p130 = scmp.eq.s32.totalorder %s17, 0
      %p131 = por %p129, %p130
      %p132 = scmp.ne.s32.totalorder %s121, %s124
      %p133 = scmp.eq.s32.totalorder %s22, 1
      %p134 = por %p132, %p133
      %p135 = scmp.ne.s32.totalorder %s124, %s125
      %p136 = scmp.eq.s32.totalorder %s22, 0
      %p137 = por %p135, %p136
      %p138 = scmp.ne.s32.totalorder %s124, %s125
      %p139 = scmp.eq.s32.totalorder %s23, 1
      %p140 = por %p138, %p139
      %p142 = scmp.ne.s32.totalorder %s125, %s141
      %p143 = scmp.eq.s32.totalorder %s23, 0
      %p144 = por %p142, %p143
      %s145 = ssub.s32 %s17, %s24
      %p146 = scmp.eq.s32.totalorder %s145, 0
      %s148 = sadd.s32 %s147, 1
      %s149 = scalar_select %p146, %s147, %s148
      %p152 = pneg %p146
      %p153 = scmp.eq.s32.totalorder %s17, 1
      %p154 = por %p152, %p153
      %p155 = scmp.ne.s32.totalorder %s147, %s150
      %p156 = scmp.eq.s32.totalorder %s17, 0
      %p157 = por %p155, %p156
      %p158 = scmp.ne.s32.totalorder %s147, %s150
      %p159 = scmp.eq.s32.totalorder %s22, 1
      %p160 = por %p158, %p159
      %p161 = scmp.ne.s32.totalorder %s150, %s151
      %p162 = scmp.eq.s32.totalorder %s22, 0
      %p163 = por %p161, %p162
      %p164 = scmp.ne.s32.totalorder %s150, %s151
      %p165 = scmp.eq.s32.totalorder %s23, 1
      %p166 = por %p164, %p165
      %p168 = scmp.ne.s32.totalorder %s151, %s167
      %p169 = scmp.eq.s32.totalorder %s23, 0
      %p170 = por %p168, %p169
      %s171 = ssub.s32 %s17, %s24
      %p172 = scmp.eq.s32.totalorder %s171, 0
      %s174 = sadd.s32 %s173, 1
      %s175 = scalar_select %p172, %s173, %s174
      %p178 = pneg %p172
      %p179 = scmp.eq.s32.totalorder %s17, 1
      %p180 = por %p178, %p179
      %p181 = scmp.ne.s32.totalorder %s173, %s176
      %p182 = scmp.eq.s32.totalorder %s17, 0
      %p183 = por %p181, %p182
      %p184 = scmp.ne.s32.totalorder %s173, %s176
      %p185 = scmp.eq.s32.totalorder %s22, 1
      %p186 = por %p184, %p185
      %p187 = scmp.ne.s32.totalorder %s176, %s177
      %p188 = scmp.eq.s32.totalorder %s22, 0
      %p189 = por %p187, %p188
      %p190 = scmp.ne.s32.totalorder %s176, %s177
      %p191 = scmp.eq.s32.totalorder %s23, 1
      %p192 = por %p190, %p191
      %p194 = scmp.ne.s32.totalorder %s177, %s193
      %p195 = scmp.eq.s32.totalorder %s23, 0
      %p196 = por %p194, %p195
      %s197 = ssub.s32 %s17, %s24
      %p198 = scmp.eq.s32.totalorder %s197, 0
      %s200 = sadd.s32 %s199, 1
      %s201 = scalar_select %p198, %s199, %s200
      %p204 = pneg %p198
      %p205 = scmp.eq.s32.totalorder %s17, 1
      %p206 = por %p204, %p205
      %p207 = scmp.ne.s32.totalorder %s199, %s202
      %p208 = scmp.eq.s32.totalorder %s17, 0
      %p209 = por %p207, %p208
      %p210 = scmp.ne.s32.totalorder %s199, %s202
      %p211 = scmp.eq.s32.totalorder %s22, 1
      %p212 = por %p210, %p211
      %p213 = scmp.ne.s32.totalorder %s202, %s203
      %p214 = scmp.eq.s32.totalorder %s22, 0
      %p215 = por %p213, %p214
      %p216 = scmp.ne.s32.totalorder %s202, %s203
      %p217 = scmp.eq.s32.totalorder %s23, 1
      %p218 = por %p216, %p217
      %p220 = scmp.ne.s32.totalorder %s203, %s219
      %p221 = scmp.eq.s32.totalorder %s23, 0
      %p222 = por %p220, %p221
      %s224 = sadd.s32 %s223, 1
      %p227 = scmp.eq.s32.totalorder %s17, 1
      %p228 = scmp.ne.s32.totalorder %s223, %s225
      %p229 = scmp.eq.s32.totalorder %s17, 0
      %p230 = por %p228, %p229
      %p231 = scmp.ne.s32.totalorder %s223, %s225
      %p232 = scmp.eq.s32.totalorder %s22, 1
      %p233 = por %p231, %p232
      %p234 = scmp.ne.s32.totalorder %s225, %s226
      %p235 = scmp.eq.s32.totalorder %s22, 0
      %p236 = por %p234, %p235
      %p237 = scmp.ne.s32.totalorder %s225, %s226
      %p238 = scmp.eq.s32.totalorder %s23, 1
      %p239 = por %p237, %p238
      %p241 = scmp.ne.s32.totalorder %s226, %s240
      %p242 = scmp.eq.s32.totalorder %s23, 0
      %p243 = por %p241, %p242
      %p244 = scmp.le.s32.totalorder 1, %s17
      %p245 = scmp.lt.s32.totalorder %s17, 3
      %p246 = pnand %p244, %p245
      %p247 = pneg %p246
      // Predicated region
      $region9: #{tpu_custom_call.1} parent=5 // pred_check
        _
      $region10: #{tpu_custom_call.1} parent=5 // pred_check_branch
        %249 = sbr.rel (%p246) target = $region12
      $region11: #{tpu_custom_call.1} parent=5 // pred_region
        %s250 = ssub.s32 %s17, 1
        // Predicated region
        $region13: #{tpu_custom_call.1} parent=11 // pred_check
          %p251 = pneg %p38
        $region14: #{tpu_custom_call.1} parent=11 // pred_check_branch
          %253 = sbr.rel (%p251) target = $region16
        $region15: #{tpu_custom_call.1} parent=11 // pred_region
          %s255 = ssub.s32 128, 128
          %256 = vsyncadd [#allocation4], %s255
          %s258 = sshll.u32 [#allocation3], 4
          %s259 = int_to_ptr.vmem [resolvable:$true] %s258
          %261 = dma.hbm_to_vmem [thread:$0]  %s0, 128, %s259, [#allocation4]
        $region16: #{tpu_custom_call.1} parent=11 // pred_fallthru
          _
        // Predicated region
        $region17: #{tpu_custom_call.1} parent=11 // pred_check
          %p262 = pneg %p59
        $region18: #{tpu_custom_call.1} parent=11 // pred_check_branch
          %264 = sbr.rel (%p262) target = $region20
        $region19: #{tpu_custom_call.1} parent=11 // pred_region
          %s266 = ssub.s32 256, 256
          %267 = vsyncadd [#allocation7], %s266
          %s268 = sshll.u32 [#allocation6], 4
          %s269 = int_to_ptr.vmem [resolvable:$true] %s268
          %274 = dma.hbm_to_vmem [thread:$0]  %s1, 256, %s269, [#allocation7], 128, 128, 8
        $region20: #{tpu_custom_call.1} parent=11 // pred_fallthru
          _
      $region12: #{tpu_custom_call.1} parent=5 // pred_fallthru
        _
      %p275 = scmp.lt.s32.totalorder %s17, 2
      // Predicated region
      $region21: #{tpu_custom_call.1} parent=5 // pred_check
        %p276 = pneg %p275
      $region22: #{tpu_custom_call.1} parent=5 // pred_check_branch
        %278 = sbr.rel (%p276) target = $region24
      $region23: #{tpu_custom_call.1} parent=5 // pred_region
        // Predicated region
        $region25: #{tpu_custom_call.1} parent=23 // pred_check
          %p279 = pneg %p79
        $region26: #{tpu_custom_call.1} parent=23 // pred_check_branch
          %281 = sbr.rel (%p279) target = $region28
        $region27: #{tpu_custom_call.1} parent=23 // pred_region
          %s282 = sand.u32 %s17, 1
          %s283 = scalar_lea.sflag [#allocation4], %s282
          %s284 = sand.u32 %s69, 1
          %s285 = smul.addr %s284, 32
          %s286 = scalar_lea.vmem [#allocation8], %s285
          %s288 = ssub.s32 512, 512
          %289 = vsyncadd %s283, %s288
          %s290 = smul.addr %s17, 4
          %s291 = smul.addr %s290, 128
          %s292 = scalar_lea.hbm %s2, %s291
          %s293 = sshll.u32 %s286, 4
          %s294 = int_to_ptr.vmem [resolvable:$true] %s293
          %299 = dma.hbm_to_vmem [thread:$0]  %s292, 512, %s294, %s283, 128, 128, 8
        $region28: #{tpu_custom_call.1} parent=23 // pred_fallthru
          _
        // Predicated region
        $region29: #{tpu_custom_call.1} parent=23 // pred_check
          %p300 = pneg %p105
        $region30: #{tpu_custom_call.1} parent=23 // pred_check_branch
          %302 = sbr.rel (%p300) target = $region32
        $region31: #{tpu_custom_call.1} parent=23 // pred_region
          %p303 = scmp.lt.s32.totalorder %s17, 1
          %s304 = scalar_select %p303, %s17, 1
          %s305 = scalar_lea.vmem %s3, %s304
        $region32: #{tpu_custom_call.1} parent=23 // pred_fallthru
          _
        // Predicated region
        $region33: #{tpu_custom_call.1} parent=23 // pred_check
          %p306 = pneg %p131
        $region34: #{tpu_custom_call.1} parent=23 // pred_check_branch
          %308 = sbr.rel (%p306) target = $region36
        $region35: #{tpu_custom_call.1} parent=23 // pred_region
          %s309 = sand.u32 %s17, 1
          %s310 = scalar_lea.sflag [#allocation4], %s309
          %s311 = sand.u32 %s121, 1
          %s312 = smul.addr %s311, 32
          %s313 = scalar_lea.vmem [#allocation9], %s312
          %s315 = ssub.s32 512, 512
          %316 = vsyncadd %s310, %s315
          %s317 = smul.addr %s17, 4
          %s318 = smul.addr %s317, 128
          %s319 = scalar_lea.hbm %s4, %s318
          %s320 = sshll.u32 %s313, 4
          %s321 = int_to_ptr.vmem [resolvable:$true] %s320
          %326 = dma.hbm_to_vmem [thread:$0]  %s319, 512, %s321, %s310, 128, 128, 8
        $region36: #{tpu_custom_call.1} parent=23 // pred_fallthru
          _
        // Predicated region
        $region37: #{tpu_custom_call.1} parent=23 // pred_check
          %p327 = pneg %p157
        $region38: #{tpu_custom_call.1} parent=23 // pred_check_branch
          %329 = sbr.rel (%p327) target = $region40
        $region39: #{tpu_custom_call.1} parent=23 // pred_region
          %p330 = scmp.lt.s32.totalorder %s17, 1
          %s331 = scalar_select %p330, %s17, 1
          %s332 = scalar_lea.vmem %s5, %s331
        $region40: #{tpu_custom_call.1} parent=23 // pred_fallthru
          _
        // Predicated region
        $region41: #{tpu_custom_call.1} parent=23 // pred_check
          %p333 = pneg %p183
        $region42: #{tpu_custom_call.1} parent=23 // pred_check_branch
          %335 = sbr.rel (%p333) target = $region44
        $region43: #{tpu_custom_call.1} parent=23 // pred_region
          %p336 = scmp.lt.s32.totalorder %s17, 1
          %s337 = scalar_select %p336, %s17, 1
          %s338 = scalar_lea.vmem %s6, %s337
        $region44: #{tpu_custom_call.1} parent=23 // pred_fallthru
          _
        // Predicated region
        $region45: #{tpu_custom_call.1} parent=23 // pred_check
          %p339 = pneg %p209
        $region46: #{tpu_custom_call.1} parent=23 // pred_check_branch
          %341 = sbr.rel (%p339) target = $region48
        $region47: #{tpu_custom_call.1} parent=23 // pred_region
          %p342 = scmp.lt.s32.totalorder %s17, 1
          %s343 = scalar_select %p342, %s17, 1
          %s344 = scalar_lea.vmem %s7, %s343
        $region48: #{tpu_custom_call.1} parent=23 // pred_fallthru
          _
      $region24: #{tpu_custom_call.1} parent=5 // pred_fallthru
        _
      %p345 = scmp.le.s32.totalorder 1, %s17
      %p346 = scmp.lt.s32.totalorder %s17, 3
      %p347 = pnand %p345, %p346
      %p348 = pneg %p347
      // Predicated region
      $region49: #{tpu_custom_call.1} parent=5 // pred_check
        _
      $region50: #{tpu_custom_call.1} parent=5 // pred_check_branch
        %350 = sbr.rel (%p347) target = $region52
      $region51: #{tpu_custom_call.1} parent=5 // pred_region
        %s351 = ssub.s32 %s17, 1
        // Predicated region
        $region53: #{tpu_custom_call.1} parent=51 // pred_check
          %p352 = pneg %p38
        $region54: #{tpu_custom_call.1} parent=51 // pred_check_branch
          %354 = sbr.rel (%p352) target = $region56
        $region55: #{tpu_custom_call.1} parent=51 // pred_region
          %355 = dma.done [#allocation4], 128
        $region56: #{tpu_custom_call.1} parent=51 // pred_fallthru
          _
        // Predicated region
        $region57: #{tpu_custom_call.1} parent=51 // pred_check
          %p356 = pneg %p59
        $region58: #{tpu_custom_call.1} parent=51 // pred_check_branch
          %358 = sbr.rel (%p356) target = $region60
        $region59: #{tpu_custom_call.1} parent=51 // pred_region
          %359 = dma.done [#allocation7], 256
        $region60: #{tpu_custom_call.1} parent=51 // pred_fallthru
          _
        %s360 = sand.u32 %s22, 1
        %s361 = scalar_lea.sflag [#allocation4], %s360
        %s362 = sand.u32 %s72, 1
        %s363 = smul.addr %s362, 32
        %s364 = scalar_lea.vmem [#allocation8], %s363
        // Predicated region
        $region61: #{tpu_custom_call.1} parent=51 // pred_check
          %p365 = pneg %p85
        $region62: #{tpu_custom_call.1} parent=51 // pred_check_branch
          %367 = sbr.rel (%p365) target = $region64
        $region63: #{tpu_custom_call.1} parent=51 // pred_region
          %368 = dma.done %s361, 512
        $region64: #{tpu_custom_call.1} parent=51 // pred_fallthru
          _
        %s369 = sand.u32 %s22, 1
        %s370 = scalar_lea.sflag [#allocation4], %s369
        %s371 = sand.u32 %s124, 1
        %s372 = smul.addr %s371, 32
        %s373 = scalar_lea.vmem [#allocation9], %s372
        // Predicated region
        $region65: #{tpu_custom_call.1} parent=51 // pred_check
          %p374 = pneg %p137
        $region66: #{tpu_custom_call.1} parent=51 // pred_check_branch
          %376 = sbr.rel (%p374) target = $region68
        $region67: #{tpu_custom_call.1} parent=51 // pred_region
          %377 = dma.done %s370, 512
        $region68: #{tpu_custom_call.1} parent=51 // pred_fallthru
          _
        %p378 = pneg %p38
        %p379 = pneg %p35
        %p380 = pneg %p59
        %p381 = pneg %p56
        %s382 = sand.u32 %s22, 1
        %s383 = scalar_lea.sflag [#allocation4], %s382
        %s384 = sand.u32 %s72, 1
        %s385 = smul.addr %s384, 32
        %s386 = scalar_lea.vmem [#allocation8], %s385
        %p387 = pneg %p85
        %p388 = pneg %p82
        %p389 = scmp.lt.s32.totalorder %s22, 1
        %s390 = scalar_select %p389, %s22, 1
        %s391 = scalar_lea.vmem %s3, %s390
        %p392 = pneg %p111
        %p393 = pneg %p108
        %s394 = sand.u32 %s22, 1
        %s395 = scalar_lea.sflag [#allocation4], %s394
        %s396 = sand.u32 %s124, 1
        %s397 = smul.addr %s396, 32
        %s398 = scalar_lea.vmem [#allocation9], %s397
        %p399 = pneg %p137
        %p400 = pneg %p134
        %p401 = scmp.lt.s32.totalorder %s22, 1
        %s402 = scalar_select %p401, %s22, 1
        %s403 = scalar_lea.vmem %s5, %s402
        %p404 = pneg %p163
        %p405 = pneg %p160
        %p406 = scmp.lt.s32.totalorder %s22, 1
        %s407 = scalar_select %p406, %s22, 1
        %s408 = scalar_lea.vmem %s6, %s407
        %p409 = pneg %p189
        %p410 = pneg %p186
        %p411 = scmp.lt.s32.totalorder %s22, 1
        %s412 = scalar_select %p411, %s22, 1
        %s413 = scalar_lea.vmem %s7, %s412
        %p414 = pneg %p215
        %p415 = pneg %p212
        %p416 = pneg %p236
        %p417 = pneg %p233
        %p418 = scmp.lt.s32.totalorder %s22, 1
        %s419 = scalar_select %p418, %s22, 1
        %s420 = scalar_lea.vmem %s3, %s419
        %p421 = scmp.lt.s32.totalorder %s22, 1
        %s422 = scalar_select %p421, %s22, 1
        %s423 = scalar_lea.vmem %s5, %s422
        %p424 = scmp.lt.s32.totalorder %s22, 1
        %s425 = scalar_select %p424, %s22, 1
        %s426 = scalar_lea.vmem %s6, %s425
        %p427 = scmp.lt.s32.totalorder %s22, 1
        %s428 = scalar_select %p427, %s22, 1
        %s429 = scalar_lea.vmem %s7, %s428
        %p430 = scmp.eq.s32.totalorder %s22, 0
        // Predicated region
        $region69: #{tpu_custom_call.1} parent=51 // pred_check
          %p431 = pneg %p430
        $region70: #{tpu_custom_call.1} parent=51 // pred_check_branch
          %433 = sbr.rel (%p431) target = $region72
        $region71: #{tpu_custom_call.1} parent=51 // pred_region
          %v434 = vld [vmem:[#allocation6] sm:$0xff]
          %v435 = vld [vmem:[#allocation6 + $0x8] sm:$0xff]
          %vm436 = vcmask 261120
          %437 = vst.msk [vmem:[#allocation2] sm:$0xff] %vm436, %v434
          %438 = vst.msk [vmem:[#allocation2 + $0x8] sm:$0xff] %vm436, %v435
        $region72: #{tpu_custom_call.1} parent=51 // pred_fallthru
          _
        %v439 = vld [vmem:[#allocation2] sm:$0xff]
        %v440 = vld [vmem:[#allocation2 + $0x8] sm:$0xff]
        %v441 = vld [vmem:[%s364] sm:$0xff]
        %v442 = vld [vmem:[%s364 + $0x8] sm:$0xff]
        %v443 = vld [vmem:[%s364 + $0x10] sm:$0xff]
        %v444 = vld [vmem:[%s364 + $0x18] sm:$0xff]
        %v445 = vld [vmem:[%s420] sm:$0x1]
        %v447 = vlaneseq
        %v448 = vshrl.u32 %v447, 7
        %v449 = vsub.s32 0, %v448
        %v450 = vrot.slane %v445, %v449
        %vm452 = vcmask 261120
        %v454 = vsel %vm452, %v439, 0
        %v457 = vsel %vm452, %v440, 0
        %459 = vmatprep.subr.mxu0 0.0
        %460 = vmatpush1.msra.mxu0 %v441
        %461 = vmatprep.subr.mxu0 0.0
        %462 = vmatpush1.msra.mxu0 %v442
        %463 = vmatprep.subr.mxu0 0.0
        %464 = vmatpush1.msra.mxu0 %v443
        %465 = vmatprep.subr.mxu0 0.0
        %466 = vmatpush1.msra.mxu0 %v444
        %467 = vmatprep.subr.mxu0 0.0
        %468 = vmatpush1.msra.mxu0 0.0
        %469 = vmatprep.subr.mxu0 0.0
        %470 = vmatpush1.msra.mxu0 0.0
        %471 = vmatprep.subr.mxu0 0.0
        %472 = vmatpush1.msra.mxu0 0.0
        %473 = vmatprep.subr.mxu0 0.0
        %474 = vmatpush1.msra.mxu0 0.0
        %475 = vmatprep.subr.mxu0 0.0
        %476 = vmatpush1.msra.mxu0 0.0
        %477 = vmatprep.subr.mxu0 0.0
        %478 = vmatpush1.msra.mxu0 0.0
        %479 = vmatprep.subr.mxu0 0.0
        %480 = vmatpush1.msra.mxu0 0.0
        %481 = vmatprep.subr.mxu0 0.0
        %482 = vmatpush1.msra.mxu0 0.0
        %483 = vmatprep.subr.mxu0 0.0
        %484 = vmatpush1.msra.mxu0 0.0
        %485 = vmatprep.subr.mxu0 0.0
        %486 = vmatpush1.msra.mxu0 0.0
        %487 = vmatprep.subr.mxu0 0.0
        %488 = vmatpush1.msra.mxu0 0.0
        %489 = vmatprep.subr.mxu0 0.0
        %490 = vmatpush1.msra.mxu0 0.0
        %491 = vmatprep.subr.mxu0 0.0
        %492 = vmatpush1.msra.mxu0 0.0
        %493 = vmatprep.subr.mxu0 0.0
        %494 = vmatpush1.msra.mxu0 0.0
        %495 = vmatprep.subr.mxu0 0.0
        %496 = vmatpush1.msra.mxu0 0.0
        %497 = vmatprep.subr.mxu0 0.0
        %498 = vmatpush1.msra.mxu0 0.0
        %499 = vmatprep.subr.mxu0 0.0
        %500 = vmatpush1.msra.mxu0 0.0
        %501 = vmatprep.subr.mxu0 0.0
        %502 = vmatpush1.msra.mxu0 0.0
        %503 = vmatprep.subr.mxu0 0.0
        %504 = vmatpush1.msra.mxu0 0.0
        %505 = vmatprep.subr.mxu0 0.0
        %506 = vmatpush1.msra.mxu0 0.0
        %507 = vmatprep.subr.mxu0 0.0
        %508 = vmatpush1.msra.mxu0 0.0
        %509 = vmatprep.subr.mxu0 0.0
        %510 = vmatpush1.msra.mxu0 0.0
        %511 = vmatprep.subr.mxu0 0.0
        %512 = vmatpush1.msra.mxu0 0.0
        %513 = vmatprep.subr.mxu0 0.0
        %514 = vmatpush1.msra.mxu0 0.0
        %515 = vmatprep.subr.mxu0 0.0
        %516 = vmatpush1.msra.mxu0 0.0
        %517 = vmatprep.subr.mxu0 0.0
        %518 = vmatpush1.msra.mxu0 0.0
        %519 = vmatprep.subr.mxu0 0.0
        %520 = vmatpush1.msra.mxu0 0.0
        %521 = vmatprep.subr.mxu0 0.0
        %522 = vmatpush1.msra.mxu0 0.0
        %523 = vmatprep.mubr.f32.mxu0 0.0
        %524 = vmatmul.mubr.f32.gmra.mrb[0].mxu0 %v454
        %v525 = vpop.f32.mrb[0].mxu0
        %v526 = vadd.f32 %v450, %v525
        %v527 = vpop.f32.mrb[0].mxu0
        %528 = vmatprep.mubr.f32.mxu0 0.0
        %529 = vmatmul.mubr.f32.gmra.mrb[0].mxu0 %v457
        %v530 = vpop.f32.mrb[0].mxu0
        %v531 = vadd.f32 %v450, %v530
        %v532 = vpop.f32.mrb[0].mxu0
        %533 = vdwg.mxu0
        %v534 = vld [vmem:[#allocation3] sm:$0xff]
        %v535 = vld [vmem:[%s373] sm:$0xff]
        %v536 = vld [vmem:[%s373 + $0x8] sm:$0xff]
        %v537 = vld [vmem:[%s373 + $0x10] sm:$0xff]
        %v538 = vld [vmem:[%s373 + $0x18] sm:$0xff]
        %540 = vrot.lane.b32.xlu0 %v526, 96
        %v541 = vpop.permute.xlu0 %540
        %vm542 = vcmask 64512
        %v543 = vsel %vm542, %v526, 0
        %v545 = vsel %vm542, %v541, 0
        %547 = vmatprep.subr.mxu0 0.0
        %548 = vmatpush1.xpose.msra.mxu0 %v545
        %549 = vmatprep.subr.mxu0 0.0
        %550 = vmatpush1.xpose.msra.mxu0 0.0
        %551 = vmatprep.subr.mxu0 0.0
        %552 = vmatpush1.xpose.msra.mxu0 0.0
        %553 = vmatprep.subr.mxu0 0.0
        %554 = vmatpush1.xpose.msra.mxu0 0.0
        %555 = vmatprep.subr.mxu0 0.0
        %556 = vmatpush1.xpose.msra.mxu0 0.0
        %557 = vmatprep.subr.mxu0 0.0
        %558 = vmatpush1.xpose.msra.mxu0 0.0
        %559 = vmatprep.subr.mxu0 0.0
        %560 = vmatpush1.xpose.msra.mxu0 0.0
        %561 = vmatprep.subr.mxu0 0.0
        %562 = vmatpush1.xpose.msra.mxu0 0.0
        %563 = vmatprep.subr.mxu0 0.0
        %564 = vmatpush1.xpose.msra.mxu0 0.0
        %565 = vmatprep.subr.mxu0 0.0
        %566 = vmatpush1.xpose.msra.mxu0 0.0
        %567 = vmatprep.subr.mxu0 0.0
        %568 = vmatpush1.xpose.msra.mxu0 0.0
        %569 = vmatprep.subr.mxu0 0.0
        %570 = vmatpush1.xpose.msra.mxu0 0.0
        %571 = vmatprep.subr.mxu0 0.0
        %572 = vmatpush1.xpose.msra.mxu0 0.0
        %573 = vmatprep.subr.mxu0 0.0
        %574 = vmatpush1.xpose.msra.mxu0 0.0
        %575 = vmatprep.subr.mxu0 0.0
        %576 = vmatpush1.xpose.msra.mxu0 0.0
        %577 = vmatprep.subr.mxu0 0.0
        %578 = vmatpush1.xpose.msra.mxu0 0.0
        %579 = vmatprep.subr.mxu0 0.0
        %580 = vmatpush1.xpose.msra.mxu0 0.0
        %581 = vmatprep.subr.mxu0 0.0
        %582 = vmatpush1.xpose.msra.mxu0 0.0
        %583 = vmatprep.subr.mxu0 0.0
        %584 = vmatpush1.xpose.msra.mxu0 0.0
        %585 = vmatprep.subr.mxu0 0.0
        %586 = vmatpush1.xpose.msra.mxu0 0.0
        %587 = vmatprep.subr.mxu0 0.0
        %588 = vmatpush1.xpose.msra.mxu0 0.0
        %589 = vmatprep.subr.mxu0 0.0
        %590 = vmatpush1.xpose.msra.mxu0 0.0
        %591 = vmatprep.subr.mxu0 0.0
        %592 = vmatpush1.xpose.msra.mxu0 0.0
        %593 = vmatprep.subr.mxu0 0.0
        %594 = vmatpush1.xpose.msra.mxu0 0.0
        %595 = vmatprep.subr.mxu0 0.0
        %596 = vmatpush1.xpose.msra.mxu0 0.0
        %597 = vmatprep.subr.mxu0 0.0
        %598 = vmatpush1.xpose.msra.mxu0 0.0
        %599 = vmatprep.subr.mxu0 0.0
        %600 = vmatpush1.xpose.msra.mxu0 0.0
        %601 = vmatprep.subr.mxu0 0.0
        %602 = vmatpush1.xpose.msra.mxu0 0.0
        %603 = vmatprep.subr.mxu0 0.0
        %604 = vmatpush1.xpose.msra.mxu0 0.0
        %605 = vmatprep.subr.mxu0 0.0
        %606 = vmatpush1.xpose.msra.mxu0 0.0
        %607 = vmatprep.subr.mxu0 0.0
        %608 = vmatpush1.xpose.msra.mxu0 0.0
        %609 = vmatprep.subr.mxu0 0.0
        %610 = vmatpush1.xpose.msra.mxu0 0.0
        %611 = vmatprep.mubr.f32.mxu0 0.0
        %612 = vmatmul.mubr.f32.gmra.mrb[0].mxu0 %v543
        %v613 = vpop.f32.mrb[0].mxu0
        %v614 = vadd.f32 0.0, %v613
        %v615 = vpop.f32.mrb[0].mxu0
        %616 = vdwg.mxu0
        %618 = vrot.lane.b32.xlu0 %v531, 96
        %v619 = vpop.permute.xlu0 %618
        %v620 = vsel %vm542, %v531, 0
        %v622 = vsel %vm542, %v619, 0
        %624 = vmatprep.subr.mxu0 0.0
        %625 = vmatpush1.xpose.msra.mxu0 %v622
        %626 = vmatprep.subr.mxu0 0.0
        %627 = vmatpush1.xpose.msra.mxu0 0.0
        %628 = vmatprep.subr.mxu0 0.0
        %629 = vmatpush1.xpose.msra.mxu0 0.0
        %630 = vmatprep.subr.mxu0 0.0
        %631 = vmatpush1.xpose.msra.mxu0 0.0
        %632 = vmatprep.subr.mxu0 0.0
        %633 = vmatpush1.xpose.msra.mxu0 0.0
        %634 = vmatprep.subr.mxu0 0.0
        %635 = vmatpush1.xpose.msra.mxu0 0.0
        %636 = vmatprep.subr.mxu0 0.0
        %637 = vmatpush1.xpose.msra.mxu0 0.0
        %638 = vmatprep.subr.mxu0 0.0
        %639 = vmatpush1.xpose.msra.mxu0 0.0
        %640 = vmatprep.subr.mxu0 0.0
        %641 = vmatpush1.xpose.msra.mxu0 0.0
        %642 = vmatprep.subr.mxu0 0.0
        %643 = vmatpush1.xpose.msra.mxu0 0.0
        %644 = vmatprep.subr.mxu0 0.0
        %645 = vmatpush1.xpose.msra.mxu0 0.0
        %646 = vmatprep.subr.mxu0 0.0
        %647 = vmatpush1.xpose.msra.mxu0 0.0
        %648 = vmatprep.subr.mxu0 0.0
        %649 = vmatpush1.xpose.msra.mxu0 0.0
        %650 = vmatprep.subr.mxu0 0.0
        %651 = vmatpush1.xpose.msra.mxu0 0.0
        %652 = vmatprep.subr.mxu0 0.0
        %653 = vmatpush1.xpose.msra.mxu0 0.0
        %654 = vmatprep.subr.mxu0 0.0
        %655 = vmatpush1.xpose.msra.mxu0 0.0
        %656 = vmatprep.subr.mxu0 0.0
        %657 = vmatpush1.xpose.msra.mxu0 0.0
        %658 = vmatprep.subr.mxu0 0.0
        %659 = vmatpush1.xpose.msra.mxu0 0.0
        %660 = vmatprep.subr.mxu0 0.0
        %661 = vmatpush1.xpose.msra.mxu0 0.0
        %662 = vmatprep.subr.mxu0 0.0
        %663 = vmatpush1.xpose.msra.mxu0 0.0
        %664 = vmatprep.subr.mxu0 0.0
        %665 = vmatpush1.xpose.msra.mxu0 0.0
        %666 = vmatprep.subr.mxu0 0.0
        %667 = vmatpush1.xpose.msra.mxu0 0.0
        %668 = vmatprep.subr.mxu0 0.0
        %669 = vmatpush1.xpose.msra.mxu0 0.0
        %670 = vmatprep.subr.mxu0 0.0
        %671 = vmatpush1.xpose.msra.mxu0 0.0
        %672 = vmatprep.subr.mxu0 0.0
        %673 = vmatpush1.xpose.msra.mxu0 0.0
        %674 = vmatprep.subr.mxu0 0.0
        %675 = vmatpush1.xpose.msra.mxu0 0.0
        %676 = vmatprep.subr.mxu0 0.0
        %677 = vmatpush1.xpose.msra.mxu0 0.0
        %678 = vmatprep.subr.mxu0 0.0
        %679 = vmatpush1.xpose.msra.mxu0 0.0
        %680 = vmatprep.subr.mxu0 0.0
        %681 = vmatpush1.xpose.msra.mxu0 0.0
        %682 = vmatprep.subr.mxu0 0.0
        %683 = vmatpush1.xpose.msra.mxu0 0.0
        %684 = vmatprep.subr.mxu0 0.0
        %685 = vmatpush1.xpose.msra.mxu0 0.0
        %686 = vmatprep.subr.mxu0 0.0
        %687 = vmatpush1.xpose.msra.mxu0 0.0
        %688 = vmatprep.mubr.f32.mxu0 0.0
        %689 = vmatmul.mubr.f32.gmra.mrb[0].mxu0 %v620
        %v690 = vpop.f32.mrb[0].mxu0
        %v691 = vadd.f32 0.0, %v690
        %v692 = vpop.f32.mrb[0].mxu0
        %693 = vdwg.mxu0
        %v694 = vmul.f32 %v614, 0.35355338
        %v695 = vmul.f32 %v691, 0.35355338
        %v696 = vadd.f32 %v694, %v534
        %v697 = vadd.f32 %v695, %v534
        %v698 = vsel %vm542, %v696, -inf
        %699 = vmax.xlane.f32.xlu0 %v698
        %v700 = vpop.xlane.xlu0 %699
        %v701 = vsel %vm542, %v697, -inf
        %702 = vmax.xlane.f32.xlu0 %v701
        %v703 = vpop.xlane.xlu0 %702
        %v704 = vsub.f32 %v696, %v700
        %v705 = vsub.f32 %v697, %v703
        %v706 = vmul.f32 %v704, 1.442695
        %v707 = vpow.pop %v706
        %v708 = vmul.f32 %v705, 1.442695
        %v709 = vpow.pop %v708
        %v710 = vsel %vm542, %v707, 0.0
        %711 = vadd.xlane.f32.xlu0 %v710
        %v712 = vpop.xlane.xlu0 %711
        %v713 = vsel %vm542, %v709, 0.0
        %714 = vadd.xlane.f32.xlu0 %v713
        %v715 = vpop.xlane.xlu0 %714
        %v716 = vrcp.pop %v712
        %v717 = vrcp.pop %v715
        %v718 = vmul.f32 %v707, %v716
        %v719 = vmul.f32 %v709, %v717
        %720 = vrot.lane.b32.xlu0 %v526, 64
        %v721 = vpop.permute.xlu0 %720
        %v724 = vsel %vm542, %v718, 0
        %726 = vmatprep.subr.mxu0 0.0
        %727 = vmatpush1.msra.mxu0 %v721
        %728 = vmatprep.subr.mxu0 0.0
        %729 = vmatpush1.msra.mxu0 0.0
        %730 = vmatprep.subr.mxu0 0.0
        %731 = vmatpush1.msra.mxu0 0.0
        %732 = vmatprep.subr.mxu0 0.0
        %733 = vmatpush1.msra.mxu0 0.0
        %734 = vmatprep.subr.mxu0 0.0
        %735 = vmatpush1.msra.mxu0 0.0
        %736 = vmatprep.subr.mxu0 0.0
        %737 = vmatpush1.msra.mxu0 0.0
        %738 = vmatprep.subr.mxu0 0.0
        %739 = vmatpush1.msra.mxu0 0.0
        %740 = vmatprep.subr.mxu0 0.0
        %741 = vmatpush1.msra.mxu0 0.0
        %742 = vmatprep.subr.mxu0 0.0
        %743 = vmatpush1.msra.mxu0 0.0
        %744 = vmatprep.subr.mxu0 0.0
        %745 = vmatpush1.msra.mxu0 0.0
        %746 = vmatprep.subr.mxu0 0.0
        %747 = vmatpush1.msra.mxu0 0.0
        %748 = vmatprep.subr.mxu0 0.0
        %749 = vmatpush1.msra.mxu0 0.0
        %750 = vmatprep.subr.mxu0 0.0
        %751 = vmatpush1.msra.mxu0 0.0
        %752 = vmatprep.subr.mxu0 0.0
        %753 = vmatpush1.msra.mxu0 0.0
        %754 = vmatprep.subr.mxu0 0.0
        %755 = vmatpush1.msra.mxu0 0.0
        %756 = vmatprep.subr.mxu0 0.0
        %757 = vmatpush1.msra.mxu0 0.0
        %758 = vmatprep.subr.mxu0 0.0
        %759 = vmatpush1.msra.mxu0 0.0
        %760 = vmatprep.subr.mxu0 0.0
        %761 = vmatpush1.msra.mxu0 0.0
        %762 = vmatprep.subr.mxu0 0.0
        %763 = vmatpush1.msra.mxu0 0.0
        %764 = vmatprep.subr.mxu0 0.0
        %765 = vmatpush1.msra.mxu0 0.0
        %766 = vmatprep.subr.mxu0 0.0
        %767 = vmatpush1.msra.mxu0 0.0
        %768 = vmatprep.subr.mxu0 0.0
        %769 = vmatpush1.msra.mxu0 0.0
        %770 = vmatprep.subr.mxu0 0.0
        %771 = vmatpush1.msra.mxu0 0.0
        %772 = vmatprep.subr.mxu0 0.0
        %773 = vmatpush1.msra.mxu0 0.0
        %774 = vmatprep.subr.mxu0 0.0
        %775 = vmatpush1.msra.mxu0 0.0
        %776 = vmatprep.subr.mxu0 0.0
        %777 = vmatpush1.msra.mxu0 0.0
        %778 = vmatprep.subr.mxu0 0.0
        %779 = vmatpush1.msra.mxu0 0.0
        %780 = vmatprep.subr.mxu0 0.0
        %781 = vmatpush1.msra.mxu0 0.0
        %782 = vmatprep.subr.mxu0 0.0
        %783 = vmatpush1.msra.mxu0 0.0
        %784 = vmatprep.subr.mxu0 0.0
        %785 = vmatpush1.msra.mxu0 0.0
        %786 = vmatprep.subr.mxu0 0.0
        %787 = vmatpush1.msra.mxu0 0.0
        %788 = vmatprep.subr.mxu0 0.0
        %789 = vmatpush1.msra.mxu0 0.0
        %790 = vmatprep.mubr.f32.mxu0 0.0
        %791 = vmatmul.mubr.f32.gmra.mrb[0].mxu0 %v724
        %v792 = vpop.f32.mrb[0].mxu0
        %v793 = vadd.f32 0.0, %v792
        %v794 = vpop.f32.mrb[0].mxu0
        %795 = vdwg.mxu0
        %796 = vrot.lane.b32.xlu0 %v531, 64
        %v797 = vpop.permute.xlu0 %796
        %v800 = vsel %vm542, %v719, 0
        %802 = vmatprep.subr.mxu0 0.0
        %803 = vmatpush1.msra.mxu0 %v797
        %804 = vmatprep.subr.mxu0 0.0
        %805 = vmatpush1.msra.mxu0 0.0
        %806 = vmatprep.subr.mxu0 0.0
        %807 = vmatpush1.msra.mxu0 0.0
        %808 = vmatprep.subr.mxu0 0.0
        %809 = vmatpush1.msra.mxu0 0.0
        %810 = vmatprep.subr.mxu0 0.0
        %811 = vmatpush1.msra.mxu0 0.0
        %812 = vmatprep.subr.mxu0 0.0
        %813 = vmatpush1.msra.mxu0 0.0
        %814 = vmatprep.subr.mxu0 0.0
        %815 = vmatpush1.msra.mxu0 0.0
        %816 = vmatprep.subr.mxu0 0.0
        %817 = vmatpush1.msra.mxu0 0.0
        %818 = vmatprep.subr.mxu0 0.0
        %819 = vmatpush1.msra.mxu0 0.0
        %820 = vmatprep.subr.mxu0 0.0
        %821 = vmatpush1.msra.mxu0 0.0
        %822 = vmatprep.subr.mxu0 0.0
        %823 = vmatpush1.msra.mxu0 0.0
        %824 = vmatprep.subr.mxu0 0.0
        %825 = vmatpush1.msra.mxu0 0.0
        %826 = vmatprep.subr.mxu0 0.0
        %827 = vmatpush1.msra.mxu0 0.0
        %828 = vmatprep.subr.mxu0 0.0
        %829 = vmatpush1.msra.mxu0 0.0
        %830 = vmatprep.subr.mxu0 0.0
        %831 = vmatpush1.msra.mxu0 0.0
        %832 = vmatprep.subr.mxu0 0.0
        %833 = vmatpush1.msra.mxu0 0.0
        %834 = vmatprep.subr.mxu0 0.0
        %835 = vmatpush1.msra.mxu0 0.0
        %836 = vmatprep.subr.mxu0 0.0
        %837 = vmatpush1.msra.mxu0 0.0
        %838 = vmatprep.subr.mxu0 0.0
        %839 = vmatpush1.msra.mxu0 0.0
        %840 = vmatprep.subr.mxu0 0.0
        %841 = vmatpush1.msra.mxu0 0.0
        %842 = vmatprep.subr.mxu0 0.0
        %843 = vmatpush1.msra.mxu0 0.0
        %844 = vmatprep.subr.mxu0 0.0
        %845 = vmatpush1.msra.mxu0 0.0
        %846 = vmatprep.subr.mxu0 0.0
        %847 = vmatpush1.msra.mxu0 0.0
        %848 = vmatprep.subr.mxu0 0.0
        %849 = vmatpush1.msra.mxu0 0.0
        %850 = vmatprep.subr.mxu0 0.0
        %851 = vmatpush1.msra.mxu0 0.0
        %852 = vmatprep.subr.mxu0 0.0
        %853 = vmatpush1.msra.mxu0 0.0
        %854 = vmatprep.subr.mxu0 0.0
        %855 = vmatpush1.msra.mxu0 0.0
        %856 = vmatprep.subr.mxu0 0.0
        %857 = vmatpush1.msra.mxu0 0.0
        %858 = vmatprep.subr.mxu0 0.0
        %859 = vmatpush1.msra.mxu0 0.0
        %860 = vmatprep.subr.mxu0 0.0
        %861 = vmatpush1.msra.mxu0 0.0
        %862 = vmatprep.subr.mxu0 0.0
        %863 = vmatpush1.msra.mxu0 0.0
        %864 = vmatprep.subr.mxu0 0.0
        %865 = vmatpush1.msra.mxu0 0.0
        %866 = vmatprep.mubr.f32.mxu0 0.0
        %867 = vmatmul.mubr.f32.gmra.mrb[0].mxu0 %v800
        %v868 = vpop.f32.mrb[0].mxu0
        %v869 = vadd.f32 0.0, %v868
        %v870 = vpop.f32.mrb[0].mxu0
        %871 = vdwg.mxu0
        %872 = vrot.lane.b32.xlu0 %v526, 120
        %v873 = vpop.permute.xlu0 %872
        %874 = vrot.lane.b32.xlu0 %v526, 88
        %v875 = vpop.permute.xlu0 %874
        %v876 = vsel %vm542, %v873, 0
        %v878 = vsel %vm542, %v875, 0
        %880 = vmatprep.subr.mxu0 0.0
        %881 = vmatpush1.xpose.msra.mxu0 %v878
        %882 = vmatprep.subr.mxu0 0.0
        %883 = vmatpush1.xpose.msra.mxu0 0.0
        %884 = vmatprep.subr.mxu0 0.0
        %885 = vmatpush1.xpose.msra.mxu0 0.0
        %886 = vmatprep.subr.mxu0 0.0
        %887 = vmatpush1.xpose.msra.mxu0 0.0
        %888 = vmatprep.subr.mxu0 0.0
        %889 = vmatpush1.xpose.msra.mxu0 0.0
        %890 = vmatprep.subr.mxu0 0.0
        %891 = vmatpush1.xpose.msra.mxu0 0.0
        %892 = vmatprep.subr.mxu0 0.0
        %893 = vmatpush1.xpose.msra.mxu0 0.0
        %894 = vmatprep.subr.mxu0 0.0
        %895 = vmatpush1.xpose.msra.mxu0 0.0
        %896 = vmatprep.subr.mxu0 0.0
        %897 = vmatpush1.xpose.msra.mxu0 0.0
        %898 = vmatprep.subr.mxu0 0.0
        %899 = vmatpush1.xpose.msra.mxu0 0.0
        %900 = vmatprep.subr.mxu0 0.0
        %901 = vmatpush1.xpose.msra.mxu0 0.0
        %902 = vmatprep.subr.mxu0 0.0
        %903 = vmatpush1.xpose.msra.mxu0 0.0
        %904 = vmatprep.subr.mxu0 0.0
        %905 = vmatpush1.xpose.msra.mxu0 0.0
        %906 = vmatprep.subr.mxu0 0.0
        %907 = vmatpush1.xpose.msra.mxu0 0.0
        %908 = vmatprep.subr.mxu0 0.0
        %909 = vmatpush1.xpose.msra.mxu0 0.0
        %910 = vmatprep.subr.mxu0 0.0
        %911 = vmatpush1.xpose.msra.mxu0 0.0
        %912 = vmatprep.subr.mxu0 0.0
        %913 = vmatpush1.xpose.msra.mxu0 0.0
        %914 = vmatprep.subr.mxu0 0.0
        %915 = vmatpush1.xpose.msra.mxu0 0.0
        %916 = vmatprep.subr.mxu0 0.0
        %917 = vmatpush1.xpose.msra.mxu0 0.0
        %918 = vmatprep.subr.mxu0 0.0
        %919 = vmatpush1.xpose.msra.mxu0 0.0
        %920 = vmatprep.subr.mxu0 0.0
        %921 = vmatpush1.xpose.msra.mxu0 0.0
        %922 = vmatprep.subr.mxu0 0.0
        %923 = vmatpush1.xpose.msra.mxu0 0.0
        %924 = vmatprep.subr.mxu0 0.0
        %925 = vmatpush1.xpose.msra.mxu0 0.0
        %926 = vmatprep.subr.mxu0 0.0
        %927 = vmatpush1.xpose.msra.mxu0 0.0
        %928 = vmatprep.subr.mxu0 0.0
        %929 = vmatpush1.xpose.msra.mxu0 0.0
        %930 = vmatprep.subr.mxu0 0.0
        %931 = vmatpush1.xpose.msra.mxu0 0.0
        %932 = vmatprep.subr.mxu0 0.0
        %933 = vmatpush1.xpose.msra.mxu0 0.0
        %934 = vmatprep.subr.mxu0 0.0
        %935 = vmatpush1.xpose.msra.mxu0 0.0
        %936 = vmatprep.subr.mxu0 0.0
        %937 = vmatpush1.xpose.msra.mxu0 0.0
        %938 = vmatprep.subr.mxu0 0.0
        %939 = vmatpush1.xpose.msra.mxu0 0.0
        %940 = vmatprep.subr.mxu0 0.0
        %941 = vmatpush1.xpose.msra.mxu0 0.0
        %942 = vmatprep.subr.mxu0 0.0
        %943 = vmatpush1.xpose.msra.mxu0 0.0
        %944 = vmatprep.mubr.f32.mxu0 0.0
        %945 = vmatmul.mubr.f32.gmra.mrb[0].mxu0 %v876
        %v946 = vpop.f32.mrb[0].mxu0
        %v947 = vadd.f32 0.0, %v946
        %v948 = vpop.f32.mrb[0].mxu0
        %949 = vdwg.mxu0
        %950 = vrot.lane.b32.xlu0 %v531, 120
        %v951 = vpop.permute.xlu0 %950
        %952 = vrot.lane.b32.xlu0 %v531, 88
        %v953 = vpop.permute.xlu0 %952
        %v954 = vsel %vm542, %v951, 0
        %v956 = vsel %vm542, %v953, 0
        %958 = vmatprep.subr.mxu0 0.0
        %959 = vmatpush1.xpose.msra.mxu0 %v956
        %960 = vmatprep.subr.mxu0 0.0
        %961 = vmatpush1.xpose.msra.mxu0 0.0
        %962 = vmatprep.subr.mxu0 0.0
        %963 = vmatpush1.xpose.msra.mxu0 0.0
        %964 = vmatprep.subr.mxu0 0.0
        %965 = vmatpush1.xpose.msra.mxu0 0.0
        %966 = vmatprep.subr.mxu0 0.0
        %967 = vmatpush1.xpose.msra.mxu0 0.0
        %968 = vmatprep.subr.mxu0 0.0
        %969 = vmatpush1.xpose.msra.mxu0 0.0
        %970 = vmatprep.subr.mxu0 0.0
        %971 = vmatpush1.xpose.msra.mxu0 0.0
        %972 = vmatprep.subr.mxu0 0.0
        %973 = vmatpush1.xpose.msra.mxu0 0.0
        %974 = vmatprep.subr.mxu0 0.0
        %975 = vmatpush1.xpose.msra.mxu0 0.0
        %976 = vmatprep.subr.mxu0 0.0
        %977 = vmatpush1.xpose.msra.mxu0 0.0
        %978 = vmatprep.subr.mxu0 0.0
        %979 = vmatpush1.xpose.msra.mxu0 0.0
        %980 = vmatprep.subr.mxu0 0.0
        %981 = vmatpush1.xpose.msra.mxu0 0.0
        %982 = vmatprep.subr.mxu0 0.0
        %983 = vmatpush1.xpose.msra.mxu0 0.0
        %984 = vmatprep.subr.mxu0 0.0
        %985 = vmatpush1.xpose.msra.mxu0 0.0
        %986 = vmatprep.subr.mxu0 0.0
        %987 = vmatpush1.xpose.msra.mxu0 0.0
        %988 = vmatprep.subr.mxu0 0.0
        %989 = vmatpush1.xpose.msra.mxu0 0.0
        %990 = vmatprep.subr.mxu0 0.0
        %991 = vmatpush1.xpose.msra.mxu0 0.0
        %992 = vmatprep.subr.mxu0 0.0
        %993 = vmatpush1.xpose.msra.mxu0 0.0
        %994 = vmatprep.subr.mxu0 0.0
        %995 = vmatpush1.xpose.msra.mxu0 0.0
        %996 = vmatprep.subr.mxu0 0.0
        %997 = vmatpush1.xpose.msra.mxu0 0.0
        %998 = vmatprep.subr.mxu0 0.0
        %999 = vmatpush1.xpose.msra.mxu0 0.0
        %1000 = vmatprep.subr.mxu0 0.0
        %1001 = vmatpush1.xpose.msra.mxu0 0.0
        %1002 = vmatprep.subr.mxu0 0.0
        %1003 = vmatpush1.xpose.msra.mxu0 0.0
        %1004 = vmatprep.subr.mxu0 0.0
        %1005 = vmatpush1.xpose.msra.mxu0 0.0
        %1006 = vmatprep.subr.mxu0 0.0
        %1007 = vmatpush1.xpose.msra.mxu0 0.0
        %1008 = vmatprep.subr.mxu0 0.0
        %1009 = vmatpush1.xpose.msra.mxu0 0.0
        %1010 = vmatprep.subr.mxu0 0.0
        %1011 = vmatpush1.xpose.msra.mxu0 0.0
        %1012 = vmatprep.subr.mxu0 0.0
        %1013 = vmatpush1.xpose.msra.mxu0 0.0
        %1014 = vmatprep.subr.mxu0 0.0
        %1015 = vmatpush1.xpose.msra.mxu0 0.0
        %1016 = vmatprep.subr.mxu0 0.0
        %1017 = vmatpush1.xpose.msra.mxu0 0.0
        %1018 = vmatprep.subr.mxu0 0.0
        %1019 = vmatpush1.xpose.msra.mxu0 0.0
        %1020 = vmatprep.subr.mxu0 0.0
        %1021 = vmatpush1.xpose.msra.mxu0 0.0
        %1022 = vmatprep.mubr.f32.mxu0 0.0
        %1023 = vmatmul.mubr.f32.gmra.mrb[0].mxu0 %v954
        %v1024 = vpop.f32.mrb[0].mxu0
        %v1025 = vadd.f32 0.0, %v1024
        %v1026 = vpop.f32.mrb[0].mxu0
        %1027 = vdwg.mxu0
        %v1028 = vmul.f32 %v947, 0.35355338
        %v1029 = vmul.f32 %v1025, 0.35355338
        %v1030 = vadd.f32 %v1028, %v534
        %v1031 = vadd.f32 %v1029, %v534
        %v1032 = vsel %vm542, %v1030, -inf
        %1033 = vmax.xlane.f32.xlu0 %v1032
        %v1034 = vpop.xlane.xlu0 %1033
        %v1035 = vsel %vm542, %v1031, -inf
        %1036 = vmax.xlane.f32.xlu0 %v1035
        %v1037 = vpop.xlane.xlu0 %1036
        %v1038 = vsub.f32 %v1030, %v1034
        %v1039 = vsub.f32 %v1031, %v1037
        %v1040 = vmul.f32 %v1038, 1.442695
        %v1041 = vpow.pop %v1040
        %v1042 = vmul.f32 %v1039, 1.442695
        %v1043 = vpow.pop %v1042
        %v1044 = vsel %vm542, %v1041, 0.0
        %1045 = vadd.xlane.f32.xlu0 %v1044
        %v1046 = vpop.xlane.xlu0 %1045
        %v1047 = vsel %vm542, %v1043, 0.0
        %1048 = vadd.xlane.f32.xlu0 %v1047
        %v1049 = vpop.xlane.xlu0 %1048
        %v1050 = vrcp.pop %v1046
        %v1051 = vrcp.pop %v1049
        %v1052 = vmul.f32 %v1041, %v1050
        %v1053 = vmul.f32 %v1043, %v1051
        %1054 = vrot.lane.b32.xlu0 %v526, 56
        %v1055 = vpop.permute.xlu0 %1054
        %v1058 = vsel %vm542, %v1052, 0
        %1060 = vmatprep.subr.mxu0 0.0
        %1061 = vmatpush1.msra.mxu0 %v1055
        %1062 = vmatprep.subr.mxu0 0.0
        %1063 = vmatpush1.msra.mxu0 0.0
        %1064 = vmatprep.subr.mxu0 0.0
        %1065 = vmatpush1.msra.mxu0 0.0
        %1066 = vmatprep.subr.mxu0 0.0
        %1067 = vmatpush1.msra.mxu0 0.0
        %1068 = vmatprep.subr.mxu0 0.0
        %1069 = vmatpush1.msra.mxu0 0.0
        %1070 = vmatprep.subr.mxu0 0.0
        %1071 = vmatpush1.msra.mxu0 0.0
        %1072 = vmatprep.subr.mxu0 0.0
        %1073 = vmatpush1.msra.mxu0 0.0
        %1074 = vmatprep.subr.mxu0 0.0
        %1075 = vmatpush1.msra.mxu0 0.0
        %1076 = vmatprep.subr.mxu0 0.0
        %1077 = vmatpush1.msra.mxu0 0.0
        %1078 = vmatprep.subr.mxu0 0.0
        %1079 = vmatpush1.msra.mxu0 0.0
        %1080 = vmatprep.subr.mxu0 0.0
        %1081 = vmatpush1.msra.mxu0 0.0
        %1082 = vmatprep.subr.mxu0 0.0
        %1083 = vmatpush1.msra.mxu0 0.0
        %1084 = vmatprep.subr.mxu0 0.0
        %1085 = vmatpush1.msra.mxu0 0.0
        %1086 = vmatprep.subr.mxu0 0.0
        %1087 = vmatpush1.msra.mxu0 0.0
        %1088 = vmatprep.subr.mxu0 0.0
        %1089 = vmatpush1.msra.mxu0 0.0
        %1090 = vmatprep.subr.mxu0 0.0
        %1091 = vmatpush1.msra.mxu0 0.0
        %1092 = vmatprep.subr.mxu0 0.0
        %1093 = vmatpush1.msra.mxu0 0.0
        %1094 = vmatprep.subr.mxu0 0.0
        %1095 = vmatpush1.msra.mxu0 0.0
        %1096 = vmatprep.subr.mxu0 0.0
        %1097 = vmatpush1.msra.mxu0 0.0
        %1098 = vmatprep.subr.mxu0 0.0
        %1099 = vmatpush1.msra.mxu0 0.0
        %1100 = vmatprep.subr.mxu0 0.0
        %1101 = vmatpush1.msra.mxu0 0.0
        %1102 = vmatprep.subr.mxu0 0.0
        %1103 = vmatpush1.msra.mxu0 0.0
        %1104 = vmatprep.subr.mxu0 0.0
        %1105 = vmatpush1.msra.mxu0 0.0
        %1106 = vmatprep.subr.mxu0 0.0
        %1107 = vmatpush1.msra.mxu0 0.0
        %1108 = vmatprep.subr.mxu0 0.0
        %1109 = vmatpush1.msra.mxu0 0.0
        %1110 = vmatprep.subr.mxu0 0.0
        %1111 = vmatpush1.msra.mxu0 0.0
        %1112 = vmatprep.subr.mxu0 0.0
        %1113 = vmatpush1.msra.mxu0 0.0
        %1114 = vmatprep.subr.mxu0 0.0
        %1115 = vmatpush1.msra.mxu0 0.0
        %1116 = vmatprep.subr.mxu0 0.0
        %1117 = vmatpush1.msra.mxu0 0.0
        %1118 = vmatprep.subr.mxu0 0.0
        %1119 = vmatpush1.msra.mxu0 0.0
        %1120 = vmatprep.subr.mxu0 0.0
        %1121 = vmatpush1.msra.mxu0 0.0
        %1122 = vmatprep.subr.mxu0 0.0
        %1123 = vmatpush1.msra.mxu0 0.0
        %1124 = vmatprep.mubr.f32.mxu0 0.0
        %1125 = vmatmul.mubr.f32.gmra.mrb[0].mxu0 %v1058
        %v1126 = vpop.f32.mrb[0].mxu0
        %v1127 = vadd.f32 0.0, %v1126
        %v1128 = vpop.f32.mrb[0].mxu0
        %1129 = vdwg.mxu0
        %1130 = vrot.lane.b32.xlu0 %v531, 56
        %v1131 = vpop.permute.xlu0 %1130
        %v1134 = vsel %vm542, %v1053, 0
        %1136 = vmatprep.subr.mxu0 0.0
        %1137 = vmatpush1.msra.mxu0 %v1131
        %1138 = vmatprep.subr.mxu0 0.0
        %1139 = vmatpush1.msra.mxu0 0.0
        %1140 = vmatprep.subr.mxu0 0.0
        %1141 = vmatpush1.msra.mxu0 0.0
        %1142 = vmatprep.subr.mxu0 0.0
        %1143 = vmatpush1.msra.mxu0 0.0
        %1144 = vmatprep.subr.mxu0 0.0
        %1145 = vmatpush1.msra.mxu0 0.0
        %1146 = vmatprep.subr.mxu0 0.0
        %1147 = vmatpush1.msra.mxu0 0.0
        %1148 = vmatprep.subr.mxu0 0.0
        %1149 = vmatpush1.msra.mxu0 0.0
        %1150 = vmatprep.subr.mxu0 0.0
        %1151 = vmatpush1.msra.mxu0 0.0
        %1152 = vmatprep.subr.mxu0 0.0
        %1153 = vmatpush1.msra.mxu0 0.0
        %1154 = vmatprep.subr.mxu0 0.0
        %1155 = vmatpush1.msra.mxu0 0.0
        %1156 = vmatprep.subr.mxu0 0.0
        %1157 = vmatpush1.msra.mxu0 0.0
        %1158 = vmatprep.subr.mxu0 0.0
        %1159 = vmatpush1.msra.mxu0 0.0
        %1160 = vmatprep.subr.mxu0 0.0
        %1161 = vmatpush1.msra.mxu0 0.0
        %1162 = vmatprep.subr.mxu0 0.0
        %1163 = vmatpush1.msra.mxu0 0.0
        %1164 = vmatprep.subr.mxu0 0.0
        %1165 = vmatpush1.msra.mxu0 0.0
        %1166 = vmatprep.subr.mxu0 0.0
        %1167 = vmatpush1.msra.mxu0 0.0
        %1168 = vmatprep.subr.mxu0 0.0
        %1169 = vmatpush1.msra.mxu0 0.0
        %1170 = vmatprep.subr.mxu0 0.0
        %1171 = vmatpush1.msra.mxu0 0.0
        %1172 = vmatprep.subr.mxu0 0.0
        %1173 = vmatpush1.msra.mxu0 0.0
        %1174 = vmatprep.subr.mxu0 0.0
        %1175 = vmatpush1.msra.mxu0 0.0
        %1176 = vmatprep.subr.mxu0 0.0
        %1177 = vmatpush1.msra.mxu0 0.0
        %1178 = vmatprep.subr.mxu0 0.0
        %1179 = vmatpush1.msra.mxu0 0.0
        %1180 = vmatprep.subr.mxu0 0.0
        %1181 = vmatpush1.msra.mxu0 0.0
        %1182 = vmatprep.subr.mxu0 0.0
        %1183 = vmatpush1.msra.mxu0 0.0
        %1184 = vmatprep.subr.mxu0 0.0
        %1185 = vmatpush1.msra.mxu0 0.0
        %1186 = vmatprep.subr.mxu0 0.0
        %1187 = vmatpush1.msra.mxu0 0.0
        %1188 = vmatprep.subr.mxu0 0.0
        %1189 = vmatpush1.msra.mxu0 0.0
        %1190 = vmatprep.subr.mxu0 0.0
        %1191 = vmatpush1.msra.mxu0 0.0
        %1192 = vmatprep.subr.mxu0 0.0
        %1193 = vmatpush1.msra.mxu0 0.0
        %1194 = vmatprep.subr.mxu0 0.0
        %1195 = vmatpush1.msra.mxu0 0.0
        %1196 = vmatprep.subr.mxu0 0.0
        %1197 = vmatpush1.msra.mxu0 0.0
        %1198 = vmatprep.subr.mxu0 0.0
        %1199 = vmatpush1.msra.mxu0 0.0
        %1200 = vmatprep.mubr.f32.mxu0 0.0
        %1201 = vmatmul.mubr.f32.gmra.mrb[0].mxu0 %v1134
        %v1202 = vpop.f32.mrb[0].mxu0
        %v1203 = vadd.f32 0.0, %v1202
        %v1204 = vpop.f32.mrb[0].mxu0
        %1205 = vdwg.mxu0
        %v1207 = vsel %vm542, %v1127, 0
        %v1210 = vsel %vm542, %v1203, 0
        %1212 = vmatprep.subr.mxu0 0.0
        %1213 = vmatpush1.msra.mxu0 %v536
        %1214 = vmatprep.subr.mxu0 0.0
        %1215 = vmatpush1.msra.mxu0 0.0
        %1216 = vmatprep.subr.mxu0 0.0
        %1217 = vmatpush1.msra.mxu0 0.0
        %1218 = vmatprep.subr.mxu0 0.0
        %1219 = vmatpush1.msra.mxu0 0.0
        %1220 = vmatprep.subr.mxu0 0.0
        %1221 = vmatpush1.msra.mxu0 0.0
        %1222 = vmatprep.subr.mxu0 0.0
        %1223 = vmatpush1.msra.mxu0 0.0
        %1224 = vmatprep.subr.mxu0 0.0
        %1225 = vmatpush1.msra.mxu0 0.0
        %1226 = vmatprep.subr.mxu0 0.0
        %1227 = vmatpush1.msra.mxu0 0.0
        %1228 = vmatprep.subr.mxu0 0.0
        %1229 = vmatpush1.msra.mxu0 0.0
        %1230 = vmatprep.subr.mxu0 0.0
        %1231 = vmatpush1.msra.mxu0 0.0
        %1232 = vmatprep.subr.mxu0 0.0
        %1233 = vmatpush1.msra.mxu0 0.0
        %1234 = vmatprep.subr.mxu0 0.0
        %1235 = vmatpush1.msra.mxu0 0.0
        %1236 = vmatprep.subr.mxu0 0.0
        %1237 = vmatpush1.msra.mxu0 0.0
        %1238 = vmatprep.subr.mxu0 0.0
        %1239 = vmatpush1.msra.mxu0 0.0
        %1240 = vmatprep.subr.mxu0 0.0
        %1241 = vmatpush1.msra.mxu0 0.0
        %1242 = vmatprep.subr.mxu0 0.0
        %1243 = vmatpush1.msra.mxu0 0.0
        %1244 = vmatprep.subr.mxu0 0.0
        %1245 = vmatpush1.msra.mxu0 0.0
        %1246 = vmatprep.subr.mxu0 0.0
        %1247 = vmatpush1.msra.mxu0 0.0
        %1248 = vmatprep.subr.mxu0 0.0
        %1249 = vmatpush1.msra.mxu0 0.0
        %1250 = vmatprep.subr.mxu0 0.0
        %1251 = vmatpush1.msra.mxu0 0.0
        %1252 = vmatprep.subr.mxu0 0.0
        %1253 = vmatpush1.msra.mxu0 0.0
        %1254 = vmatprep.subr.mxu0 0.0
        %1255 = vmatpush1.msra.mxu0 0.0
        %1256 = vmatprep.subr.mxu0 0.0
        %1257 = vmatpush1.msra.mxu0 0.0
        %1258 = vmatprep.subr.mxu0 0.0
        %1259 = vmatpush1.msra.mxu0 0.0
        %1260 = vmatprep.subr.mxu0 0.0
        %1261 = vmatpush1.msra.mxu0 0.0
        %1262 = vmatprep.subr.mxu0 0.0
        %1263 = vmatpush1.msra.mxu0 0.0
        %1264 = vmatprep.subr.mxu0 0.0
        %1265 = vmatpush1.msra.mxu0 0.0
        %1266 = vmatprep.subr.mxu0 0.0
        %1267 = vmatpush1.msra.mxu0 0.0
        %1268 = vmatprep.subr.mxu0 0.0
        %1269 = vmatpush1.msra.mxu0 0.0
        %1270 = vmatprep.subr.mxu0 0.0
        %1271 = vmatpush1.msra.mxu0 0.0
        %1272 = vmatprep.subr.mxu0 0.0
        %1273 = vmatpush1.msra.mxu0 0.0
        %1274 = vmatprep.subr.mxu0 0.0
        %1275 = vmatpush1.msra.mxu0 0.0
        %1276 = vmatprep.mubr.f32.mxu0 0.0
        %1277 = vmatmul.mubr.f32.gmra.mrb[0].mxu0 %v1207
        %v1278 = vpop.f32.mrb[0].mxu0
        %v1279 = vadd.f32 0.0, %v1278
        %v1280 = vpop.f32.mrb[0].mxu0
        %1281 = vmatprep.mubr.f32.mxu0 0.0
        %1282 = vmatmul.mubr.f32.gmra.mrb[0].mxu0 %v1210
        %v1283 = vpop.f32.mrb[0].mxu0
        %v1284 = vadd.f32 0.0, %v1283
        %v1285 = vpop.f32.mrb[0].mxu0
        %1286 = vdwg.mxu0
        %v1288 = vsel %vm542, %v793, 0
        %v1291 = vsel %vm542, %v869, 0
        %1293 = vmatprep.subr.mxu0 0.0
        %1294 = vmatpush1.msra.mxu0 %v535
        %1295 = vmatprep.subr.mxu0 0.0
        %1296 = vmatpush1.msra.mxu0 0.0
        %1297 = vmatprep.subr.mxu0 0.0
        %1298 = vmatpush1.msra.mxu0 0.0
        %1299 = vmatprep.subr.mxu0 0.0
        %1300 = vmatpush1.msra.mxu0 0.0
        %1301 = vmatprep.subr.mxu0 0.0
        %1302 = vmatpush1.msra.mxu0 0.0
        %1303 = vmatprep.subr.mxu0 0.0
        %1304 = vmatpush1.msra.mxu0 0.0
        %1305 = vmatprep.subr.mxu0 0.0
        %1306 = vmatpush1.msra.mxu0 0.0
        %1307 = vmatprep.subr.mxu0 0.0
        %1308 = vmatpush1.msra.mxu0 0.0
        %1309 = vmatprep.subr.mxu0 0.0
        %1310 = vmatpush1.msra.mxu0 0.0
        %1311 = vmatprep.subr.mxu0 0.0
        %1312 = vmatpush1.msra.mxu0 0.0
        %1313 = vmatprep.subr.mxu0 0.0
        %1314 = vmatpush1.msra.mxu0 0.0
        %1315 = vmatprep.subr.mxu0 0.0
        %1316 = vmatpush1.msra.mxu0 0.0
        %1317 = vmatprep.subr.mxu0 0.0
        %1318 = vmatpush1.msra.mxu0 0.0
        %1319 = vmatprep.subr.mxu0 0.0
        %1320 = vmatpush1.msra.mxu0 0.0
        %1321 = vmatprep.subr.mxu0 0.0
        %1322 = vmatpush1.msra.mxu0 0.0
        %1323 = vmatprep.subr.mxu0 0.0
        %1324 = vmatpush1.msra.mxu0 0.0
        %1325 = vmatprep.subr.mxu0 0.0
        %1326 = vmatpush1.msra.mxu0 0.0
        %1327 = vmatprep.subr.mxu0 0.0
        %1328 = vmatpush1.msra.mxu0 0.0
        %1329 = vmatprep.subr.mxu0 0.0
        %1330 = vmatpush1.msra.mxu0 0.0
        %1331 = vmatprep.subr.mxu0 0.0
        %1332 = vmatpush1.msra.mxu0 0.0
        %1333 = vmatprep.subr.mxu0 0.0
        %1334 = vmatpush1.msra.mxu0 0.0
        %1335 = vmatprep.subr.mxu0 0.0
        %1336 = vmatpush1.msra.mxu0 0.0
        %1337 = vmatprep.subr.mxu0 0.0
        %1338 = vmatpush1.msra.mxu0 0.0
        %1339 = vmatprep.subr.mxu0 0.0
        %1340 = vmatpush1.msra.mxu0 0.0
        %1341 = vmatprep.subr.mxu0 0.0
        %1342 = vmatpush1.msra.mxu0 0.0
        %1343 = vmatprep.subr.mxu0 0.0
        %1344 = vmatpush1.msra.mxu0 0.0
        %1345 = vmatprep.subr.mxu0 0.0
        %1346 = vmatpush1.msra.mxu0 0.0
        %1347 = vmatprep.subr.mxu0 0.0
        %1348 = vmatpush1.msra.mxu0 0.0
        %1349 = vmatprep.subr.mxu0 0.0
        %1350 = vmatpush1.msra.mxu0 0.0
        %1351 = vmatprep.subr.mxu0 0.0
        %1352 = vmatpush1.msra.mxu0 0.0
        %1353 = vmatprep.subr.mxu0 0.0
        %1354 = vmatpush1.msra.mxu0 0.0
        %1355 = vmatprep.subr.mxu0 0.0
        %1356 = vmatpush1.msra.mxu0 0.0
        %1357 = vmatprep.mubr.f32.mxu0 0.0
        %1358 = vmatmul.mubr.f32.gmra.mrb[0].mxu0 %v1288
        %v1359 = vpop.f32.mrb[0].mxu0
        %v1360 = vadd.f32 %v1279, %v1359
        %v1361 = vpop.f32.mrb[0].mxu0
        %1362 = vmatprep.mubr.f32.mxu0 0.0
        %1363 = vmatmul.mubr.f32.gmra.mrb[0].mxu0 %v1291
        %v1364 = vpop.f32.mrb[0].mxu0
        %v1365 = vadd.f32 %v1284, %v1364
        %v1366 = vpop.f32.mrb[0].mxu0
        %1367 = vdwg.mxu0
        %1368 = vrot.lane.b32.xlu0 %v526, 112
        %v1369 = vpop.permute.xlu0 %1368
        %1370 = vrot.lane.b32.xlu0 %v526, 80
        %v1371 = vpop.permute.xlu0 %1370
        %v1372 = vsel %vm542, %v1369, 0
        %v1374 = vsel %vm542, %v1371, 0
        %1376 = vmatprep.subr.mxu0 0.0
        %1377 = vmatpush1.xpose.msra.mxu0 %v1374
        %1378 = vmatprep.subr.mxu0 0.0
        %1379 = vmatpush1.xpose.msra.mxu0 0.0
        %1380 = vmatprep.subr.mxu0 0.0
        %1381 = vmatpush1.xpose.msra.mxu0 0.0
        %1382 = vmatprep.subr.mxu0 0.0
        %1383 = vmatpush1.xpose.msra.mxu0 0.0
        %1384 = vmatprep.subr.mxu0 0.0
        %1385 = vmatpush1.xpose.msra.mxu0 0.0
        %1386 = vmatprep.subr.mxu0 0.0
        %1387 = vmatpush1.xpose.msra.mxu0 0.0
        %1388 = vmatprep.subr.mxu0 0.0
        %1389 = vmatpush1.xpose.msra.mxu0 0.0
        %1390 = vmatprep.subr.mxu0 0.0
        %1391 = vmatpush1.xpose.msra.mxu0 0.0
        %1392 = vmatprep.subr.mxu0 0.0
        %1393 = vmatpush1.xpose.msra.mxu0 0.0
        %1394 = vmatprep.subr.mxu0 0.0
        %1395 = vmatpush1.xpose.msra.mxu0 0.0
        %1396 = vmatprep.subr.mxu0 0.0
        %1397 = vmatpush1.xpose.msra.mxu0 0.0
        %1398 = vmatprep.subr.mxu0 0.0
        %1399 = vmatpush1.xpose.msra.mxu0 0.0
        %1400 = vmatprep.subr.mxu0 0.0
        %1401 = vmatpush1.xpose.msra.mxu0 0.0
        %1402 = vmatprep.subr.mxu0 0.0
        %1403 = vmatpush1.xpose.msra.mxu0 0.0
        %1404 = vmatprep.subr.mxu0 0.0
        %1405 = vmatpush1.xpose.msra.mxu0 0.0
        %1406 = vmatprep.subr.mxu0 0.0
        %1407 = vmatpush1.xpose.msra.mxu0 0.0
        %1408 = vmatprep.subr.mxu0 0.0
        %1409 = vmatpush1.xpose.msra.mxu0 0.0
        %1410 = vmatprep.subr.mxu0 0.0
        %1411 = vmatpush1.xpose.msra.mxu0 0.0
        %1412 = vmatprep.subr.mxu0 0.0
        %1413 = vmatpush1.xpose.msra.mxu0 0.0
        %1414 = vmatprep.subr.mxu0 0.0
        %1415 = vmatpush1.xpose.msra.mxu0 0.0
        %1416 = vmatprep.subr.mxu0 0.0
        %1417 = vmatpush1.xpose.msra.mxu0 0.0
        %1418 = vmatprep.subr.mxu0 0.0
        %1419 = vmatpush1.xpose.msra.mxu0 0.0
        %1420 = vmatprep.subr.mxu0 0.0
        %1421 = vmatpush1.xpose.msra.mxu0 0.0
        %1422 = vmatprep.subr.mxu0 0.0
        %1423 = vmatpush1.xpose.msra.mxu0 0.0
        %1424 = vmatprep.subr.mxu0 0.0
        %1425 = vmatpush1.xpose.msra.mxu0 0.0
        %1426 = vmatprep.subr.mxu0 0.0
        %1427 = vmatpush1.xpose.msra.mxu0 0.0
        %1428 = vmatprep.subr.mxu0 0.0
        %1429 = vmatpush1.xpose.msra.mxu0 0.0
        %1430 = vmatprep.subr.mxu0 0.0
        %1431 = vmatpush1.xpose.msra.mxu0 0.0
        %1432 = vmatprep.subr.mxu0 0.0
        %1433 = vmatpush1.xpose.msra.mxu0 0.0
        %1434 = vmatprep.subr.mxu0 0.0
        %1435 = vmatpush1.xpose.msra.mxu0 0.0
        %1436 = vmatprep.subr.mxu0 0.0
        %1437 = vmatpush1.xpose.msra.mxu0 0.0
        %1438 = vmatprep.subr.mxu0 0.0
        %1439 = vmatpush1.xpose.msra.mxu0 0.0
        %1440 = vmatprep.mubr.f32.mxu0 0.0
        %1441 = vmatmul.mubr.f32.gmra.mrb[0].mxu0 %v1372
        %v1442 = vpop.f32.mrb[0].mxu0
        %v1443 = vadd.f32 0.0, %v1442
        %v1444 = vpop.f32.mrb[0].mxu0
        %1445 = vdwg.mxu0
        %1446 = vrot.lane.b32.xlu0 %v531, 112
        %v1447 = vpop.permute.xlu0 %1446
        %1448 = vrot.lane.b32.xlu0 %v531, 80
        %v1449 = vpop.permute.xlu0 %1448
        %v1450 = vsel %vm542, %v1447, 0
        %v1452 = vsel %vm542, %v1449, 0
        %1454 = vmatprep.subr.mxu0 0.0
        %1455 = vmatpush1.xpose.msra.mxu0 %v1452
        %1456 = vmatprep.subr.mxu0 0.0
        %1457 = vmatpush1.xpose.msra.mxu0 0.0
        %1458 = vmatprep.subr.mxu0 0.0
        %1459 = vmatpush1.xpose.msra.mxu0 0.0
        %1460 = vmatprep.subr.mxu0 0.0
        %1461 = vmatpush1.xpose.msra.mxu0 0.0
        %1462 = vmatprep.subr.mxu0 0.0
        %1463 = vmatpush1.xpose.msra.mxu0 0.0
        %1464 = vmatprep.subr.mxu0 0.0
        %1465 = vmatpush1.xpose.msra.mxu0 0.0
        %1466 = vmatprep.subr.mxu0 0.0
        %1467 = vmatpush1.xpose.msra.mxu0 0.0
        %1468 = vmatprep.subr.mxu0 0.0
        %1469 = vmatpush1.xpose.msra.mxu0 0.0
        %1470 = vmatprep.subr.mxu0 0.0
        %1471 = vmatpush1.xpose.msra.mxu0 0.0
        %1472 = vmatprep.subr.mxu0 0.0
        %1473 = vmatpush1.xpose.msra.mxu0 0.0
        %1474 = vmatprep.subr.mxu0 0.0
        %1475 = vmatpush1.xpose.msra.mxu0 0.0
        %1476 = vmatprep.subr.mxu0 0.0
        %1477 = vmatpush1.xpose.msra.mxu0 0.0
        %1478 = vmatprep.subr.mxu0 0.0
        %1479 = vmatpush1.xpose.msra.mxu0 0.0
        %1480 = vmatprep.subr.mxu0 0.0
        %1481 = vmatpush1.xpose.msra.mxu0 0.0
        %1482 = vmatprep.subr.mxu0 0.0
        %1483 = vmatpush1.xpose.msra.mxu0 0.0
        %1484 = vmatprep.subr.mxu0 0.0
        %1485 = vmatpush1.xpose.msra.mxu0 0.0
        %1486 = vmatprep.subr.mxu0 0.0
        %1487 = vmatpush1.xpose.msra.mxu0 0.0
        %1488 = vmatprep.subr.mxu0 0.0
        %1489 = vmatpush1.xpose.msra.mxu0 0.0
        %1490 = vmatprep.subr.mxu0 0.0
        %1491 = vmatpush1.xpose.msra.mxu0 0.0
        %1492 = vmatprep.subr.mxu0 0.0
        %1493 = vmatpush1.xpose.msra.mxu0 0.0
        %1494 = vmatprep.subr.mxu0 0.0
        %1495 = vmatpush1.xpose.msra.mxu0 0.0
        %1496 = vmatprep.subr.mxu0 0.0
        %1497 = vmatpush1.xpose.msra.mxu0 0.0
        %1498 = vmatprep.subr.mxu0 0.0
        %1499 = vmatpush1.xpose.msra.mxu0 0.0
        %1500 = vmatprep.subr.mxu0 0.0
        %1501 = vmatpush1.xpose.msra.mxu0 0.0
        %1502 = vmatprep.subr.mxu0 0.0
        %1503 = vmatpush1.xpose.msra.mxu0 0.0
        %1504 = vmatprep.subr.mxu0 0.0
        %1505 = vmatpush1.xpose.msra.mxu0 0.0
        %1506 = vmatprep.subr.mxu0 0.0
        %1507 = vmatpush1.xpose.msra.mxu0 0.0
        %1508 = vmatprep.subr.mxu0 0.0
        %1509 = vmatpush1.xpose.msra.mxu0 0.0
        %1510 = vmatprep.subr.mxu0 0.0
        %1511 = vmatpush1.xpose.msra.mxu0 0.0
        %1512 = vmatprep.subr.mxu0 0.0
        %1513 = vmatpush1.xpose.msra.mxu0 0.0
        %1514 = vmatprep.subr.mxu0 0.0
        %1515 = vmatpush1.xpose.msra.mxu0 0.0
        %1516 = vmatprep.subr.mxu0 0.0
        %1517 = vmatpush1.xpose.msra.mxu0 0.0
        %1518 = vmatprep.mubr.f32.mxu0 0.0
        %1519 = vmatmul.mubr.f32.gmra.mrb[0].mxu0 %v1450
        %v1520 = vpop.f32.mrb[0].mxu0
        %v1521 = vadd.f32 0.0, %v1520
        %v1522 = vpop.f32.mrb[0].mxu0
        %1523 = vdwg.mxu0
        %v1524 = vmul.f32 %v1443, 0.35355338
        %v1525 = vmul.f32 %v1521, 0.35355338
        %v1526 = vadd.f32 %v1524, %v534
        %v1527 = vadd.f32 %v1525, %v534
        %v1528 = vsel %vm542, %v1526, -inf
        %1529 = vmax.xlane.f32.xlu0 %v1528
        %v1530 = vpop.xlane.xlu0 %1529
        %v1531 = vsel %vm542, %v1527, -inf
        %1532 = vmax.xlane.f32.xlu0 %v1531
        %v1533 = vpop.xlane.xlu0 %1532
        %v1534 = vsub.f32 %v1526, %v1530
        %v1535 = vsub.f32 %v1527, %v1533
        %v1536 = vmul.f32 %v1534, 1.442695
        %v1537 = vpow.pop %v1536
        %v1538 = vmul.f32 %v1535, 1.442695
        %v1539 = vpow.pop %v1538
        %v1540 = vsel %vm542, %v1537, 0.0
        %1541 = vadd.xlane.f32.xlu0 %v1540
        %v1542 = vpop.xlane.xlu0 %1541
        %v1543 = vsel %vm542, %v1539, 0.0
        %1544 = vadd.xlane.f32.xlu0 %v1543
        %v1545 = vpop.xlane.xlu0 %1544
        %v1546 = vrcp.pop %v1542
        %v1547 = vrcp.pop %v1545
        %v1548 = vmul.f32 %v1537, %v1546
        %v1549 = vmul.f32 %v1539, %v1547
        %1550 = vrot.lane.b32.xlu0 %v526, 48
        %v1551 = vpop.permute.xlu0 %1550
        %v1554 = vsel %vm542, %v1548, 0
        %1556 = vmatprep.subr.mxu0 0.0
        %1557 = vmatpush1.msra.mxu0 %v1551
        %1558 = vmatprep.subr.mxu0 0.0
        %1559 = vmatpush1.msra.mxu0 0.0
        %1560 = vmatprep.subr.mxu0 0.0
        %1561 = vmatpush1.msra.mxu0 0.0
        %1562 = vmatprep.subr.mxu0 0.0
        %1563 = vmatpush1.msra.mxu0 0.0
        %1564 = vmatprep.subr.mxu0 0.0
        %1565 = vmatpush1.msra.mxu0 0.0
        %1566 = vmatprep.subr.mxu0 0.0
        %1567 = vmatpush1.msra.mxu0 0.0
        %1568 = vmatprep.subr.mxu0 0.0
        %1569 = vmatpush1.msra.mxu0 0.0
        %1570 = vmatprep.subr.mxu0 0.0
        %1571 = vmatpush1.msra.mxu0 0.0
        %1572 = vmatprep.subr.mxu0 0.0
        %1573 = vmatpush1.msra.mxu0 0.0
        %1574 = vmatprep.subr.mxu0 0.0
        %1575 = vmatpush1.msra.mxu0 0.0
        %1576 = vmatprep.subr.mxu0 0.0
        %1577 = vmatpush1.msra.mxu0 0.0
        %1578 = vmatprep.subr.mxu0 0.0
        %1579 = vmatpush1.msra.mxu0 0.0
        %1580 = vmatprep.subr.mxu0 0.0
        %1581 = vmatpush1.msra.mxu0 0.0
        %1582 = vmatprep.subr.mxu0 0.0
        %1583 = vmatpush1.msra.mxu0 0.0
        %1584 = vmatprep.subr.mxu0 0.0
        %1585 = vmatpush1.msra.mxu0 0.0
        %1586 = vmatprep.subr.mxu0 0.0
        %1587 = vmatpush1.msra.mxu0 0.0
        %1588 = vmatprep.subr.mxu0 0.0
        %1589 = vmatpush1.msra.mxu0 0.0
        %1590 = vmatprep.subr.mxu0 0.0
        %1591 = vmatpush1.msra.mxu0 0.0
        %1592 = vmatprep.subr.mxu0 0.0
        %1593 = vmatpush1.msra.mxu0 0.0
        %1594 = vmatprep.subr.mxu0 0.0
        %1595 = vmatpush1.msra.mxu0 0.0
        %1596 = vmatprep.subr.mxu0 0.0
        %1597 = vmatpush1.msra.mxu0 0.0
        %1598 = vmatprep.subr.mxu0 0.0
        %1599 = vmatpush1.msra.mxu0 0.0
        %1600 = vmatprep.subr.mxu0 0.0
        %1601 = vmatpush1.msra.mxu0 0.0
        %1602 = vmatprep.subr.mxu0 0.0
        %1603 = vmatpush1.msra.mxu0 0.0
        %1604 = vmatprep.subr.mxu0 0.0
        %1605 = vmatpush1.msra.mxu0 0.0
        %1606 = vmatprep.subr.mxu0 0.0
        %1607 = vmatpush1.msra.mxu0 0.0
        %1608 = vmatprep.subr.mxu0 0.0
        %1609 = vmatpush1.msra.mxu0 0.0
        %1610 = vmatprep.subr.mxu0 0.0
        %1611 = vmatpush1.msra.mxu0 0.0
        %1612 = vmatprep.subr.mxu0 0.0
        %1613 = vmatpush1.msra.mxu0 0.0
        %1614 = vmatprep.subr.mxu0 0.0
        %1615 = vmatpush1.msra.mxu0 0.0
        %1616 = vmatprep.subr.mxu0 0.0
        %1617 = vmatpush1.msra.mxu0 0.0
        %1618 = vmatprep.subr.mxu0 0.0
        %1619 = vmatpush1.msra.mxu0 0.0
        %1620 = vmatprep.mubr.f32.mxu0 0.0
        %1621 = vmatmul.mubr.f32.gmra.mrb[0].mxu0 %v1554
        %v1622 = vpop.f32.mrb[0].mxu0
        %v1623 = vadd.f32 0.0, %v1622
        %v1624 = vpop.f32.mrb[0].mxu0
        %1625 = vdwg.mxu0
        %1626 = vrot.lane.b32.xlu0 %v531, 48
        %v1627 = vpop.permute.xlu0 %1626
        %v1630 = vsel %vm542, %v1549, 0
        %1632 = vmatprep.subr.mxu0 0.0
        %1633 = vmatpush1.msra.mxu0 %v1627
        %1634 = vmatprep.subr.mxu0 0.0
        %1635 = vmatpush1.msra.mxu0 0.0
        %1636 = vmatprep.subr.mxu0 0.0
        %1637 = vmatpush1.msra.mxu0 0.0
        %1638 = vmatprep.subr.mxu0 0.0
        %1639 = vmatpush1.msra.mxu0 0.0
        %1640 = vmatprep.subr.mxu0 0.0
        %1641 = vmatpush1.msra.mxu0 0.0
        %1642 = vmatprep.subr.mxu0 0.0
        %1643 = vmatpush1.msra.mxu0 0.0
        %1644 = vmatprep.subr.mxu0 0.0
        %1645 = vmatpush1.msra.mxu0 0.0
        %1646 = vmatprep.subr.mxu0 0.0
        %1647 = vmatpush1.msra.mxu0 0.0
        %1648 = vmatprep.subr.mxu0 0.0
        %1649 = vmatpush1.msra.mxu0 0.0
        %1650 = vmatprep.subr.mxu0 0.0
        %1651 = vmatpush1.msra.mxu0 0.0
        %1652 = vmatprep.subr.mxu0 0.0
        %1653 = vmatpush1.msra.mxu0 0.0
        %1654 = vmatprep.subr.mxu0 0.0
        %1655 = vmatpush1.msra.mxu0 0.0
        %1656 = vmatprep.subr.mxu0 0.0
        %1657 = vmatpush1.msra.mxu0 0.0
        %1658 = vmatprep.subr.mxu0 0.0
        %1659 = vmatpush1.msra.mxu0 0.0
        %1660 = vmatprep.subr.mxu0 0.0
        %1661 = vmatpush1.msra.mxu0 0.0
        %1662 = vmatprep.subr.mxu0 0.0
        %1663 = vmatpush1.msra.mxu0 0.0
        %1664 = vmatprep.subr.mxu0 0.0
        %1665 = vmatpush1.msra.mxu0 0.0
        %1666 = vmatprep.subr.mxu0 0.0
        %1667 = vmatpush1.msra.mxu0 0.0
        %1668 = vmatprep.subr.mxu0 0.0
        %1669 = vmatpush1.msra.mxu0 0.0
        %1670 = vmatprep.subr.mxu0 0.0
        %1671 = vmatpush1.msra.mxu0 0.0
        %1672 = vmatprep.subr.mxu0 0.0
        %1673 = vmatpush1.msra.mxu0 0.0
        %1674 = vmatprep.subr.mxu0 0.0
        %1675 = vmatpush1.msra.mxu0 0.0
        %1676 = vmatprep.subr.mxu0 0.0
        %1677 = vmatpush1.msra.mxu0 0.0
        %1678 = vmatprep.subr.mxu0 0.0
        %1679 = vmatpush1.msra.mxu0 0.0
        %1680 = vmatprep.subr.mxu0 0.0
        %1681 = vmatpush1.msra.mxu0 0.0
        %1682 = vmatprep.subr.mxu0 0.0
        %1683 = vmatpush1.msra.mxu0 0.0
        %1684 = vmatprep.subr.mxu0 0.0
        %1685 = vmatpush1.msra.mxu0 0.0
        %1686 = vmatprep.subr.mxu0 0.0
        %1687 = vmatpush1.msra.mxu0 0.0
        %1688 = vmatprep.subr.mxu0 0.0
        %1689 = vmatpush1.msra.mxu0 0.0
        %1690 = vmatprep.subr.mxu0 0.0
        %1691 = vmatpush1.msra.mxu0 0.0
        %1692 = vmatprep.subr.mxu0 0.0
        %1693 = vmatpush1.msra.mxu0 0.0
        %1694 = vmatprep.subr.mxu0 0.0
        %1695 = vmatpush1.msra.mxu0 0.0
        %1696 = vmatprep.mubr.f32.mxu0 0.0
        %1697 = vmatmul.mubr.f32.gmra.mrb[0].mxu0 %v1630
        %v1698 = vpop.f32.mrb[0].mxu0
        %v1699 = vadd.f32 0.0, %v1698
        %v1700 = vpop.f32.mrb[0].mxu0
        %1701 = vdwg.mxu0
        %v1703 = vsel %vm542, %v1623, 0
        %v1706 = vsel %vm542, %v1699, 0
        %1708 = vmatprep.subr.mxu0 0.0
        %1709 = vmatpush1.msra.mxu0 %v537
        %1710 = vmatprep.subr.mxu0 0.0
        %1711 = vmatpush1.msra.mxu0 0.0
        %1712 = vmatprep.subr.mxu0 0.0
        %1713 = vmatpush1.msra.mxu0 0.0
        %1714 = vmatprep.subr.mxu0 0.0
        %1715 = vmatpush1.msra.mxu0 0.0
        %1716 = vmatprep.subr.mxu0 0.0
        %1717 = vmatpush1.msra.mxu0 0.0
        %1718 = vmatprep.subr.mxu0 0.0
        %1719 = vmatpush1.msra.mxu0 0.0
        %1720 = vmatprep.subr.mxu0 0.0
        %1721 = vmatpush1.msra.mxu0 0.0
        %1722 = vmatprep.subr.mxu0 0.0
        %1723 = vmatpush1.msra.mxu0 0.0
        %1724 = vmatprep.subr.mxu0 0.0
        %1725 = vmatpush1.msra.mxu0 0.0
        %1726 = vmatprep.subr.mxu0 0.0
        %1727 = vmatpush1.msra.mxu0 0.0
        %1728 = vmatprep.subr.mxu0 0.0
        %1729 = vmatpush1.msra.mxu0 0.0
        %1730 = vmatprep.subr.mxu0 0.0
        %1731 = vmatpush1.msra.mxu0 0.0
        %1732 = vmatprep.subr.mxu0 0.0
        %1733 = vmatpush1.msra.mxu0 0.0
        %1734 = vmatprep.subr.mxu0 0.0
        %1735 = vmatpush1.msra.mxu0 0.0
        %1736 = vmatprep.subr.mxu0 0.0
        %1737 = vmatpush1.msra.mxu0 0.0
        %1738 = vmatprep.subr.mxu0 0.0
        %1739 = vmatpush1.msra.mxu0 0.0
        %1740 = vmatprep.subr.mxu0 0.0
        %1741 = vmatpush1.msra.mxu0 0.0
        %1742 = vmatprep.subr.mxu0 0.0
        %1743 = vmatpush1.msra.mxu0 0.0
        %1744 = vmatprep.subr.mxu0 0.0
        %1745 = vmatpush1.msra.mxu0 0.0
        %1746 = vmatprep.subr.mxu0 0.0
        %1747 = vmatpush1.msra.mxu0 0.0
        %1748 = vmatprep.subr.mxu0 0.0
        %1749 = vmatpush1.msra.mxu0 0.0
        %1750 = vmatprep.subr.mxu0 0.0
        %1751 = vmatpush1.msra.mxu0 0.0
        %1752 = vmatprep.subr.mxu0 0.0
        %1753 = vmatpush1.msra.mxu0 0.0
        %1754 = vmatprep.subr.mxu0 0.0
        %1755 = vmatpush1.msra.mxu0 0.0
        %1756 = vmatprep.subr.mxu0 0.0
        %1757 = vmatpush1.msra.mxu0 0.0
        %1758 = vmatprep.subr.mxu0 0.0
        %1759 = vmatpush1.msra.mxu0 0.0
        %1760 = vmatprep.subr.mxu0 0.0
        %1761 = vmatpush1.msra.mxu0 0.0
        %1762 = vmatprep.subr.mxu0 0.0
        %1763 = vmatpush1.msra.mxu0 0.0
        %1764 = vmatprep.subr.mxu0 0.0
        %1765 = vmatpush1.msra.mxu0 0.0
        %1766 = vmatprep.subr.mxu0 0.0
        %1767 = vmatpush1.msra.mxu0 0.0
        %1768 = vmatprep.subr.mxu0 0.0
        %1769 = vmatpush1.msra.mxu0 0.0
        %1770 = vmatprep.subr.mxu0 0.0
        %1771 = vmatpush1.msra.mxu0 0.0
        %1772 = vmatprep.mubr.f32.mxu0 0.0
        %1773 = vmatmul.mubr.f32.gmra.mrb[0].mxu0 %v1703
        %v1774 = vpop.f32.mrb[0].mxu0
        %v1775 = vadd.f32 0.0, %v1774
        %v1776 = vpop.f32.mrb[0].mxu0
        %1777 = vmatprep.mubr.f32.mxu0 0.0
        %1778 = vmatmul.mubr.f32.gmra.mrb[0].mxu0 %v1706
        %v1779 = vpop.f32.mrb[0].mxu0
        %v1780 = vadd.f32 0.0, %v1779
        %v1781 = vpop.f32.mrb[0].mxu0
        %1782 = vdwg.mxu0
        %v1783 = vadd.f32 %v1360, %v1775
        %v1784 = vadd.f32 %v1365, %v1780
        %1785 = vrot.lane.b32.xlu0 %v526, 104
        %v1786 = vpop.permute.xlu0 %1785
        %1787 = vrot.lane.b32.xlu0 %v526, 72
        %v1788 = vpop.permute.xlu0 %1787
        %v1789 = vsel %vm542, %v1786, 0
        %v1791 = vsel %vm542, %v1788, 0
        %1793 = vmatprep.subr.mxu0 0.0
        %1794 = vmatpush1.xpose.msra.mxu0 %v1791
        %1795 = vmatprep.subr.mxu0 0.0
        %1796 = vmatpush1.xpose.msra.mxu0 0.0
        %1797 = vmatprep.subr.mxu0 0.0
        %1798 = vmatpush1.xpose.msra.mxu0 0.0
        %1799 = vmatprep.subr.mxu0 0.0
        %1800 = vmatpush1.xpose.msra.mxu0 0.0
        %1801 = vmatprep.subr.mxu0 0.0
        %1802 = vmatpush1.xpose.msra.mxu0 0.0
        %1803 = vmatprep.subr.mxu0 0.0
        %1804 = vmatpush1.xpose.msra.mxu0 0.0
        %1805 = vmatprep.subr.mxu0 0.0
        %1806 = vmatpush1.xpose.msra.mxu0 0.0
        %1807 = vmatprep.subr.mxu0 0.0
        %1808 = vmatpush1.xpose.msra.mxu0 0.0
        %1809 = vmatprep.subr.mxu0 0.0
        %1810 = vmatpush1.xpose.msra.mxu0 0.0
        %1811 = vmatprep.subr.mxu0 0.0
        %1812 = vmatpush1.xpose.msra.mxu0 0.0
        %1813 = vmatprep.subr.mxu0 0.0
        %1814 = vmatpush1.xpose.msra.mxu0 0.0
        %1815 = vmatprep.subr.mxu0 0.0
        %1816 = vmatpush1.xpose.msra.mxu0 0.0
        %1817 = vmatprep.subr.mxu0 0.0
        %1818 = vmatpush1.xpose.msra.mxu0 0.0
        %1819 = vmatprep.subr.mxu0 0.0
        %1820 = vmatpush1.xpose.msra.mxu0 0.0
        %1821 = vmatprep.subr.mxu0 0.0
        %1822 = vmatpush1.xpose.msra.mxu0 0.0
        %1823 = vmatprep.subr.mxu0 0.0
        %1824 = vmatpush1.xpose.msra.mxu0 0.0
        %1825 = vmatprep.subr.mxu0 0.0
        %1826 = vmatpush1.xpose.msra.mxu0 0.0
        %1827 = vmatprep.subr.mxu0 0.0
        %1828 = vmatpush1.xpose.msra.mxu0 0.0
        %1829 = vmatprep.subr.mxu0 0.0
        %1830 = vmatpush1.xpose.msra.mxu0 0.0
        %1831 = vmatprep.subr.mxu0 0.0
        %1832 = vmatpush1.xpose.msra.mxu0 0.0
        %1833 = vmatprep.subr.mxu0 0.0
        %1834 = vmatpush1.xpose.msra.mxu0 0.0
        %1835 = vmatprep.subr.mxu0 0.0
        %1836 = vmatpush1.xpose.msra.mxu0 0.0
        %1837 = vmatprep.subr.mxu0 0.0
        %1838 = vmatpush1.xpose.msra.mxu0 0.0
        %1839 = vmatprep.subr.mxu0 0.0
        %1840 = vmatpush1.xpose.msra.mxu0 0.0
        %1841 = vmatprep.subr.mxu0 0.0
        %1842 = vmatpush1.xpose.msra.mxu0 0.0
        %1843 = vmatprep.subr.mxu0 0.0
        %1844 = vmatpush1.xpose.msra.mxu0 0.0
        %1845 = vmatprep.subr.mxu0 0.0
        %1846 = vmatpush1.xpose.msra.mxu0 0.0
        %1847 = vmatprep.subr.mxu0 0.0
        %1848 = vmatpush1.xpose.msra.mxu0 0.0
        %1849 = vmatprep.subr.mxu0 0.0
        %1850 = vmatpush1.xpose.msra.mxu0 0.0
        %1851 = vmatprep.subr.mxu0 0.0
        %1852 = vmatpush1.xpose.msra.mxu0 0.0
        %1853 = vmatprep.subr.mxu0 0.0
        %1854 = vmatpush1.xpose.msra.mxu0 0.0
        %1855 = vmatprep.subr.mxu0 0.0
        %1856 = vmatpush1.xpose.msra.mxu0 0.0
        %1857 = vmatprep.mubr.f32.mxu0 0.0
        %1858 = vmatmul.mubr.f32.gmra.mrb[0].mxu0 %v1789
        %v1859 = vpop.f32.mrb[0].mxu0
        %v1860 = vadd.f32 0.0, %v1859
        %v1861 = vpop.f32.mrb[0].mxu0
        %1862 = vdwg.mxu0
        %1863 = vrot.lane.b32.xlu0 %v531, 104
        %v1864 = vpop.permute.xlu0 %1863
        %1865 = vrot.lane.b32.xlu0 %v531, 72
        %v1866 = vpop.permute.xlu0 %1865
        %v1867 = vsel %vm542, %v1864, 0
        %v1869 = vsel %vm542, %v1866, 0
        %1871 = vmatprep.subr.mxu0 0.0
        %1872 = vmatpush1.xpose.msra.mxu0 %v1869
        %1873 = vmatprep.subr.mxu0 0.0
        %1874 = vmatpush1.xpose.msra.mxu0 0.0
        %1875 = vmatprep.subr.mxu0 0.0
        %1876 = vmatpush1.xpose.msra.mxu0 0.0
        %1877 = vmatprep.subr.mxu0 0.0
        %1878 = vmatpush1.xpose.msra.mxu0 0.0
        %1879 = vmatprep.subr.mxu0 0.0
        %1880 = vmatpush1.xpose.msra.mxu0 0.0
        %1881 = vmatprep.subr.mxu0 0.0
        %1882 = vmatpush1.xpose.msra.mxu0 0.0
        %1883 = vmatprep.subr.mxu0 0.0
        %1884 = vmatpush1.xpose.msra.mxu0 0.0
        %1885 = vmatprep.subr.mxu0 0.0
        %1886 = vmatpush1.xpose.msra.mxu0 0.0
        %1887 = vmatprep.subr.mxu0 0.0
        %1888 = vmatpush1.xpose.msra.mxu0 0.0
        %1889 = vmatprep.subr.mxu0 0.0
        %1890 = vmatpush1.xpose.msra.mxu0 0.0
        %1891 = vmatprep.subr.mxu0 0.0
        %1892 = vmatpush1.xpose.msra.mxu0 0.0
        %1893 = vmatprep.subr.mxu0 0.0
        %1894 = vmatpush1.xpose.msra.mxu0 0.0
        %1895 = vmatprep.subr.mxu0 0.0
        %1896 = vmatpush1.xpose.msra.mxu0 0.0
        %1897 = vmatprep.subr.mxu0 0.0
        %1898 = vmatpush1.xpose.msra.mxu0 0.0
        %1899 = vmatprep.subr.mxu0 0.0
        %1900 = vmatpush1.xpose.msra.mxu0 0.0
        %1901 = vmatprep.subr.mxu0 0.0
        %1902 = vmatpush1.xpose.msra.mxu0 0.0
        %1903 = vmatprep.subr.mxu0 0.0
        %1904 = vmatpush1.xpose.msra.mxu0 0.0
        %1905 = vmatprep.subr.mxu0 0.0
        %1906 = vmatpush1.xpose.msra.mxu0 0.0
        %1907 = vmatprep.subr.mxu0 0.0
        %1908 = vmatpush1.xpose.msra.mxu0 0.0
        %1909 = vmatprep.subr.mxu0 0.0
        %1910 = vmatpush1.xpose.msra.mxu0 0.0
        %1911 = vmatprep.subr.mxu0 0.0
        %1912 = vmatpush1.xpose.msra.mxu0 0.0
        %1913 = vmatprep.subr.mxu0 0.0
        %1914 = vmatpush1.xpose.msra.mxu0 0.0
        %1915 = vmatprep.subr.mxu0 0.0
        %1916 = vmatpush1.xpose.msra.mxu0 0.0
        %1917 = vmatprep.subr.mxu0 0.0
        %1918 = vmatpush1.xpose.msra.mxu0 0.0
        %1919 = vmatprep.subr.mxu0 0.0
        %1920 = vmatpush1.xpose.msra.mxu0 0.0
        %1921 = vmatprep.subr.mxu0 0.0
        %1922 = vmatpush1.xpose.msra.mxu0 0.0
        %1923 = vmatprep.subr.mxu0 0.0
        %1924 = vmatpush1.xpose.msra.mxu0 0.0
        %1925 = vmatprep.subr.mxu0 0.0
        %1926 = vmatpush1.xpose.msra.mxu0 0.0
        %1927 = vmatprep.subr.mxu0 0.0
        %1928 = vmatpush1.xpose.msra.mxu0 0.0
        %1929 = vmatprep.subr.mxu0 0.0
        %1930 = vmatpush1.xpose.msra.mxu0 0.0
        %1931 = vmatprep.subr.mxu0 0.0
        %1932 = vmatpush1.xpose.msra.mxu0 0.0
        %1933 = vmatprep.subr.mxu0 0.0
        %1934 = vmatpush1.xpose.msra.mxu0 0.0
        %1935 = vmatprep.mubr.f32.mxu0 0.0
        %1936 = vmatmul.mubr.f32.gmra.mrb[0].mxu0 %v1867
        %v1937 = vpop.f32.mrb[0].mxu0
        %v1938 = vadd.f32 0.0, %v1937
        %v1939 = vpop.f32.mrb[0].mxu0
        %1940 = vdwg.mxu0
        %v1941 = vmul.f32 %v1860, 0.35355338
        %v1942 = vmul.f32 %v1938, 0.35355338
        %v1943 = vadd.f32 %v1941, %v534
        %v1944 = vadd.f32 %v1942, %v534
        %v1945 = vsel %vm542, %v1943, -inf
        %1946 = vmax.xlane.f32.xlu0 %v1945
        %v1947 = vpop.xlane.xlu0 %1946
        %v1948 = vsel %vm542, %v1944, -inf
        %1949 = vmax.xlane.f32.xlu0 %v1948
        %v1950 = vpop.xlane.xlu0 %1949
        %v1951 = vsub.f32 %v1943, %v1947
        %v1952 = vsub.f32 %v1944, %v1950
        %v1953 = vmul.f32 %v1951, 1.442695
        %v1954 = vpow.pop %v1953
        %v1955 = vmul.f32 %v1952, 1.442695
        %v1956 = vpow.pop %v1955
        %v1957 = vsel %vm542, %v1954, 0.0
        %1958 = vadd.xlane.f32.xlu0 %v1957
        %v1959 = vpop.xlane.xlu0 %1958
        %v1960 = vsel %vm542, %v1956, 0.0
        %1961 = vadd.xlane.f32.xlu0 %v1960
        %v1962 = vpop.xlane.xlu0 %1961
        %v1963 = vrcp.pop %v1959
        %v1964 = vrcp.pop %v1962
        %v1965 = vmul.f32 %v1954, %v1963
        %v1966 = vmul.f32 %v1956, %v1964
        %1967 = vrot.lane.b32.xlu0 %v526, 40
        %v1968 = vpop.permute.xlu0 %1967
        %v1971 = vsel %vm542, %v1965, 0
        %1973 = vmatprep.subr.mxu0 0.0
        %1974 = vmatpush1.msra.mxu0 %v1968
        %1975 = vmatprep.subr.mxu0 0.0
        %1976 = vmatpush1.msra.mxu0 0.0
        %1977 = vmatprep.subr.mxu0 0.0
        %1978 = vmatpush1.msra.mxu0 0.0
        %1979 = vmatprep.subr.mxu0 0.0
        %1980 = vmatpush1.msra.mxu0 0.0
        %1981 = vmatprep.subr.mxu0 0.0
        %1982 = vmatpush1.msra.mxu0 0.0
        %1983 = vmatprep.subr.mxu0 0.0
        %1984 = vmatpush1.msra.mxu0 0.0
        %1985 = vmatprep.subr.mxu0 0.0
        %1986 = vmatpush1.msra.mxu0 0.0
        %1987 = vmatprep.subr.mxu0 0.0
        %1988 = vmatpush1.msra.mxu0 0.0
        %1989 = vmatprep.subr.mxu0 0.0
        %1990 = vmatpush1.msra.mxu0 0.0
        %1991 = vmatprep.subr.mxu0 0.0
        %1992 = vmatpush1.msra.mxu0 0.0
        %1993 = vmatprep.subr.mxu0 0.0
        %1994 = vmatpush1.msra.mxu0 0.0
        %1995 = vmatprep.subr.mxu0 0.0
        %1996 = vmatpush1.msra.mxu0 0.0
        %1997 = vmatprep.subr.mxu0 0.0
        %1998 = vmatpush1.msra.mxu0 0.0
        %1999 = vmatprep.subr.mxu0 0.0
        %2000 = vmatpush1.msra.mxu0 0.0
        %2001 = vmatprep.subr.mxu0 0.0
        %2002 = vmatpush1.msra.mxu0 0.0
        %2003 = vmatprep.subr.mxu0 0.0
        %2004 = vmatpush1.msra.mxu0 0.0
        %2005 = vmatprep.subr.mxu0 0.0
        %2006 = vmatpush1.msra.mxu0 0.0
        %2007 = vmatprep.subr.mxu0 0.0
        %2008 = vmatpush1.msra.mxu0 0.0
        %2009 = vmatprep.subr.mxu0 0.0
        %2010 = vmatpush1.msra.mxu0 0.0
        %2011 = vmatprep.subr.mxu0 0.0
        %2012 = vmatpush1.msra.mxu0 0.0
        %2013 = vmatprep.subr.mxu0 0.0
        %2014 = vmatpush1.msra.mxu0 0.0
        %2015 = vmatprep.subr.mxu0 0.0
        %2016 = vmatpush1.msra.mxu0 0.0
        %2017 = vmatprep.subr.mxu0 0.0
        %2018 = vmatpush1.msra.mxu0 0.0
        %2019 = vmatprep.subr.mxu0 0.0
        %2020 = vmatpush1.msra.mxu0 0.0
        %2021 = vmatprep.subr.mxu0 0.0
        %2022 = vmatpush1.msra.mxu0 0.0
        %2023 = vmatprep.subr.mxu0 0.0
        %2024 = vmatpush1.msra.mxu0 0.0
        %2025 = vmatprep.subr.mxu0 0.0
        %2026 = vmatpush1.msra.mxu0 0.0
        %2027 = vmatprep.subr.mxu0 0.0
        %2028 = vmatpush1.msra.mxu0 0.0
        %2029 = vmatprep.subr.mxu0 0.0
        %2030 = vmatpush1.msra.mxu0 0.0
        %2031 = vmatprep.subr.mxu0 0.0
        %2032 = vmatpush1.msra.mxu0 0.0
        %2033 = vmatprep.subr.mxu0 0.0
        %2034 = vmatpush1.msra.mxu0 0.0
        %2035 = vmatprep.subr.mxu0 0.0
        %2036 = vmatpush1.msra.mxu0 0.0
        %2037 = vmatprep.mubr.f32.mxu0 0.0
        %2038 = vmatmul.mubr.f32.gmra.mrb[0].mxu0 %v1971
        %v2039 = vpop.f32.mrb[0].mxu0
        %v2040 = vadd.f32 0.0, %v2039
        %v2041 = vpop.f32.mrb[0].mxu0
        %2042 = vdwg.mxu0
        %2043 = vrot.lane.b32.xlu0 %v531, 40
        %v2044 = vpop.permute.xlu0 %2043
        %v2047 = vsel %vm542, %v1966, 0
        %2049 = vmatprep.subr.mxu0 0.0
        %2050 = vmatpush1.msra.mxu0 %v2044
        %2051 = vmatprep.subr.mxu0 0.0
        %2052 = vmatpush1.msra.mxu0 0.0
        %2053 = vmatprep.subr.mxu0 0.0
        %2054 = vmatpush1.msra.mxu0 0.0
        %2055 = vmatprep.subr.mxu0 0.0
        %2056 = vmatpush1.msra.mxu0 0.0
        %2057 = vmatprep.subr.mxu0 0.0
        %2058 = vmatpush1.msra.mxu0 0.0
        %2059 = vmatprep.subr.mxu0 0.0
        %2060 = vmatpush1.msra.mxu0 0.0
        %2061 = vmatprep.subr.mxu0 0.0
        %2062 = vmatpush1.msra.mxu0 0.0
        %2063 = vmatprep.subr.mxu0 0.0
        %2064 = vmatpush1.msra.mxu0 0.0
        %2065 = vmatprep.subr.mxu0 0.0
        %2066 = vmatpush1.msra.mxu0 0.0
        %2067 = vmatprep.subr.mxu0 0.0
        %2068 = vmatpush1.msra.mxu0 0.0
        %2069 = vmatprep.subr.mxu0 0.0
        %2070 = vmatpush1.msra.mxu0 0.0
        %2071 = vmatprep.subr.mxu0 0.0
        %2072 = vmatpush1.msra.mxu0 0.0
        %2073 = vmatprep.subr.mxu0 0.0
        %2074 = vmatpush1.msra.mxu0 0.0
        %2075 = vmatprep.subr.mxu0 0.0
        %2076 = vmatpush1.msra.mxu0 0.0
        %2077 = vmatprep.subr.mxu0 0.0
        %2078 = vmatpush1.msra.mxu0 0.0
        %2079 = vmatprep.subr.mxu0 0.0
        %2080 = vmatpush1.msra.mxu0 0.0
        %2081 = vmatprep.subr.mxu0 0.0
        %2082 = vmatpush1.msra.mxu0 0.0
        %2083 = vmatprep.subr.mxu0 0.0
        %2084 = vmatpush1.msra.mxu0 0.0
        %2085 = vmatprep.subr.mxu0 0.0
        %2086 = vmatpush1.msra.mxu0 0.0
        %2087 = vmatprep.subr.mxu0 0.0
        %2088 = vmatpush1.msra.mxu0 0.0
        %2089 = vmatprep.subr.mxu0 0.0
        %2090 = vmatpush1.msra.mxu0 0.0
        %2091 = vmatprep.subr.mxu0 0.0
        %2092 = vmatpush1.msra.mxu0 0.0
        %2093 = vmatprep.subr.mxu0 0.0
        %2094 = vmatpush1.msra.mxu0 0.0
        %2095 = vmatprep.subr.mxu0 0.0
        %2096 = vmatpush1.msra.mxu0 0.0
        %2097 = vmatprep.subr.mxu0 0.0
        %2098 = vmatpush1.msra.mxu0 0.0
        %2099 = vmatprep.subr.mxu0 0.0
        %2100 = vmatpush1.msra.mxu0 0.0
        %2101 = vmatprep.subr.mxu0 0.0
        %2102 = vmatpush1.msra.mxu0 0.0
        %2103 = vmatprep.subr.mxu0 0.0
        %2104 = vmatpush1.msra.mxu0 0.0
        %2105 = vmatprep.subr.mxu0 0.0
        %2106 = vmatpush1.msra.mxu0 0.0
        %2107 = vmatprep.subr.mxu0 0.0
        %2108 = vmatpush1.msra.mxu0 0.0
        %2109 = vmatprep.subr.mxu0 0.0
        %2110 = vmatpush1.msra.mxu0 0.0
        %2111 = vmatprep.subr.mxu0 0.0
        %2112 = vmatpush1.msra.mxu0 0.0
        %2113 = vmatprep.mubr.f32.mxu0 0.0
        %2114 = vmatmul.mubr.f32.gmra.mrb[0].mxu0 %v2047
        %v2115 = vpop.f32.mrb[0].mxu0
        %v2116 = vadd.f32 0.0, %v2115
        %v2117 = vpop.f32.mrb[0].mxu0
        %2118 = vdwg.mxu0
        %v2120 = vsel %vm542, %v2040, 0
        %v2123 = vsel %vm542, %v2116, 0
        %2125 = vmatprep.subr.mxu0 0.0
        %2126 = vmatpush1.msra.mxu0 %v538
        %2127 = vmatprep.subr.mxu0 0.0
        %2128 = vmatpush1.msra.mxu0 0.0
        %2129 = vmatprep.subr.mxu0 0.0
        %2130 = vmatpush1.msra.mxu0 0.0
        %2131 = vmatprep.subr.mxu0 0.0
        %2132 = vmatpush1.msra.mxu0 0.0
        %2133 = vmatprep.subr.mxu0 0.0
        %2134 = vmatpush1.msra.mxu0 0.0
        %2135 = vmatprep.subr.mxu0 0.0
        %2136 = vmatpush1.msra.mxu0 0.0
        %2137 = vmatprep.subr.mxu0 0.0
        %2138 = vmatpush1.msra.mxu0 0.0
        %2139 = vmatprep.subr.mxu0 0.0
        %2140 = vmatpush1.msra.mxu0 0.0
        %2141 = vmatprep.subr.mxu0 0.0
        %2142 = vmatpush1.msra.mxu0 0.0
        %2143 = vmatprep.subr.mxu0 0.0
        %2144 = vmatpush1.msra.mxu0 0.0
        %2145 = vmatprep.subr.mxu0 0.0
        %2146 = vmatpush1.msra.mxu0 0.0
        %2147 = vmatprep.subr.mxu0 0.0
        %2148 = vmatpush1.msra.mxu0 0.0
        %2149 = vmatprep.subr.mxu0 0.0
        %2150 = vmatpush1.msra.mxu0 0.0
        %2151 = vmatprep.subr.mxu0 0.0
        %2152 = vmatpush1.msra.mxu0 0.0
        %2153 = vmatprep.subr.mxu0 0.0
        %2154 = vmatpush1.msra.mxu0 0.0
        %2155 = vmatprep.subr.mxu0 0.0
        %2156 = vmatpush1.msra.mxu0 0.0
        %2157 = vmatprep.subr.mxu0 0.0
        %2158 = vmatpush1.msra.mxu0 0.0
        %2159 = vmatprep.subr.mxu0 0.0
        %2160 = vmatpush1.msra.mxu0 0.0
        %2161 = vmatprep.subr.mxu0 0.0
        %2162 = vmatpush1.msra.mxu0 0.0
        %2163 = vmatprep.subr.mxu0 0.0
        %2164 = vmatpush1.msra.mxu0 0.0
        %2165 = vmatprep.subr.mxu0 0.0
        %2166 = vmatpush1.msra.mxu0 0.0
        %2167 = vmatprep.subr.mxu0 0.0
        %2168 = vmatpush1.msra.mxu0 0.0
        %2169 = vmatprep.subr.mxu0 0.0
        %2170 = vmatpush1.msra.mxu0 0.0
        %2171 = vmatprep.subr.mxu0 0.0
        %2172 = vmatpush1.msra.mxu0 0.0
        %2173 = vmatprep.subr.mxu0 0.0
        %2174 = vmatpush1.msra.mxu0 0.0
        %2175 = vmatprep.subr.mxu0 0.0
        %2176 = vmatpush1.msra.mxu0 0.0
        %2177 = vmatprep.subr.mxu0 0.0
        %2178 = vmatpush1.msra.mxu0 0.0
        %2179 = vmatprep.subr.mxu0 0.0
        %2180 = vmatpush1.msra.mxu0 0.0
        %2181 = vmatprep.subr.mxu0 0.0
        %2182 = vmatpush1.msra.mxu0 0.0
        %2183 = vmatprep.subr.mxu0 0.0
        %2184 = vmatpush1.msra.mxu0 0.0
        %2185 = vmatprep.subr.mxu0 0.0
        %2186 = vmatpush1.msra.mxu0 0.0
        %2187 = vmatprep.subr.mxu0 0.0
        %2188 = vmatpush1.msra.mxu0 0.0
        %2189 = vmatprep.mubr.f32.mxu0 0.0
        %2190 = vmatmul.mubr.f32.gmra.mrb[0].mxu0 %v2120
        %v2191 = vpop.f32.mrb[0].mxu0
        %v2192 = vadd.f32 0.0, %v2191
        %v2193 = vpop.f32.mrb[0].mxu0
        %2194 = vmatprep.mubr.f32.mxu0 0.0
        %2195 = vmatmul.mubr.f32.gmra.mrb[0].mxu0 %v2123
        %v2196 = vpop.f32.mrb[0].mxu0
        %v2197 = vadd.f32 0.0, %v2196
        %v2198 = vpop.f32.mrb[0].mxu0
        %2199 = vdwg.mxu0
        %v2200 = vadd.f32 %v1783, %v2192
        %v2201 = vadd.f32 %v1784, %v2197
        %v2202 = vld [vmem:[%s423] sm:$0x1]
        %v2204 = vlaneseq
        %v2205 = vshrl.u32 %v2204, 7
        %v2206 = vsub.s32 0, %v2205
        %v2207 = vrot.slane %v2202, %v2206
        %v2209 = vadd.f32 %v2200, %v2207
        %v2210 = vadd.f32 %v2201, %v2207
        %v2211 = vadd.f32 %v439, %v2209
        %v2212 = vadd.f32 %v440, %v2210
        %v2213 = vsel %vm452, %v2211, 0.0
        %2214 = vadd.xlane.f32.xlu0 %v2213
        %v2215 = vpop.xlane.xlu0 %2214
        %v2216 = vsel %vm452, %v2212, 0.0
        %2217 = vadd.xlane.f32.xlu0 %v2216
        %v2218 = vpop.xlane.xlu0 %2217
        %v2219 = vrcp.pop 32.0
        %v2220 = vmul.f32 %v2215, %v2219
        %v2221 = vmul.f32 %v2218, %v2219
        %v2222 = vsub.f32 %v2211, %v2220
        %v2223 = vsub.f32 %v2212, %v2221
        %v2224 = vmul.f32 %v2222, %v2222
        %v2225 = vmul.f32 %v2223, %v2223
        %v2226 = vsel %vm452, %v2224, 0.0
        %2227 = vadd.xlane.f32.xlu0 %v2226
        %v2228 = vpop.xlane.xlu0 %2227
        %v2229 = vsel %vm452, %v2225, 0.0
        %2230 = vadd.xlane.f32.xlu0 %v2229
        %v2231 = vpop.xlane.xlu0 %2230
        %v2232 = vmul.f32 %v2228, %v2219
        %v2233 = vmul.f32 %v2231, %v2219
        %v2234 = vadd.f32 %v2232, 1e-05
        %v2235 = vadd.f32 %v2233, 1e-05
        %v2236 = vrsqrt.pop %v2234
        %v2237 = vrsqrt.pop %v2235
        %v2238 = vmul.f32 %v2222, %v2236
        %v2239 = vmul.f32 %v2223, %v2237
        %v2240 = vld [vmem:[%s426] sm:$0x1]
        %v2242 = vlaneseq
        %v2243 = vshrl.u32 %v2242, 7
        %v2244 = vsub.s32 0, %v2243
        %v2245 = vrot.slane %v2240, %v2244
        %v2247 = vmul.f32 %v2238, %v2245
        %v2248 = vmul.f32 %v2239, %v2245
        %v2249 = vld [vmem:[%s429] sm:$0x1]
        %v2251 = vlaneseq
        %v2252 = vshrl.u32 %v2251, 7
        %v2253 = vsub.s32 0, %v2252
        %v2254 = vrot.slane %v2249, %v2253
        %v2256 = vadd.f32 %v2247, %v2254
        %v2257 = vadd.f32 %v2248, %v2254
        %2258 = vst.msk [vmem:[#allocation2] sm:$0xff] %vm452, %v2256
        %2259 = vst.msk [vmem:[#allocation2 + $0x8] sm:$0xff] %vm452, %v2257
        %p2260 = scmp.eq.s32.totalorder %s22, 1
        // Predicated region
        $region73: #{tpu_custom_call.1} parent=51 // pred_check
          %p2261 = pneg %p2260
        $region74: #{tpu_custom_call.1} parent=51 // pred_check_branch
          %2263 = sbr.rel (%p2261) target = $region76
        $region75: #{tpu_custom_call.1} parent=51 // pred_region
          %2264 = vst.msk [vmem:[#allocation10] sm:$0xff] %vm452, %v2256
          %2265 = vst.msk [vmem:[#allocation10 + $0x8] sm:$0xff] %vm452, %v2257
        $region76: #{tpu_custom_call.1} parent=51 // pred_fallthru
          _
        // Predicated region
        $region77: #{tpu_custom_call.1} parent=51 // pred_check
          %p2266 = pneg %p233
        $region78: #{tpu_custom_call.1} parent=51 // pred_check_branch
          %2268 = sbr.rel (%p2266) target = $region80
        $region79: #{tpu_custom_call.1} parent=51 // pred_region
          %s2270 = ssub.s32 256, 256
          %2271 = vsyncadd [#allocation5], %s2270
          %s2272 = sshll.u32 [#allocation10], 4
          %s2273 = int_to_ptr.vmem [resolvable:$true] %s2272
          %2278 = dma.vmem_to_hbm [thread:$0]  %s2273, 256, %s8, [#allocation5], 128, 128, 8
        $region80: #{tpu_custom_call.1} parent=51 // pred_fallthru
          _
        // Predicated region
        $region81: #{tpu_custom_call.1} parent=51 // pred_check
          %p2279 = pneg %p233
        $region82: #{tpu_custom_call.1} parent=51 // pred_check_branch
          %2281 = sbr.rel (%p2279) target = $region84
        $region83: #{tpu_custom_call.1} parent=51 // pred_region
          %2282 = dma.done [#allocation5], 256
        $region84: #{tpu_custom_call.1} parent=51 // pred_fallthru
          _
      $region52: #{tpu_custom_call.1} parent=5 // pred_fallthru
        _
      %p2283 = scmp.le.s32.totalorder 2, %s17
      // Predicated region
      $region85: #{tpu_custom_call.1} parent=5 // pred_check
        %p2284 = pneg %p2283
      $region86: #{tpu_custom_call.1} parent=5 // pred_check_branch
        %2286 = sbr.rel (%p2284) target = $region88
      $region87: #{tpu_custom_call.1} parent=5 // pred_region
        %s2287 = ssub.s32 %s17, 2
      $region88: #{tpu_custom_call.1} parent=5 // pred_fallthru
        _
    $region6: #{tpu_custom_call.1} parent=1 // loop_footer
      %s21 = sadd.s32 1, %s17
    $region7: #{tpu_custom_call.1} parent=1 // loop_footer_branch
      %16 = sbr.rel target = $region3
    $region8: #{tpu_custom_call.1} parent=1 // loop_exit
      _
    %2288 = vsyncpa [#allocation4], 1
    %s2289 = scalar_lea.sflag [#allocation4], 1
    %2290 = vsyncpa %s2289, 1
    %2291 = vsyncpa [#allocation7], 1
    %2292 = vsyncpa [#allocation5], 1
    %s2293 = scalar_lea.sflag [#allocation5], 1
    %2294 = vsyncpa %s2293, 1

</llo_original>
